<compile_context>
chip_gen: v7x
topology: tpu7x:2x2x1
jax: 0.10.0
libtpu: 0.0.40
codegen_flags: <defaults>
</compile_context>

<pallas_src>
import functools

import jax
import jax.numpy as jnp
from jax.experimental import pallas as pl
from jax.experimental.pallas import tpu as pltpu


def _round_up(x, m):
    return ((x + m - 1) // m) * m


def _cdiv(a, b):
    return (a + b - 1) // b


def _fused_conv_kernel(x_ref, xh_ref, w_ref, b_ref, o_ref, xcat_ref, *,
                       offsets, tm, cin, cin_pad):
    # x_ref   : (1, Cin, TM)            current flat-image tile
    # xh_ref  : (1, Cin, HALO)          halo past the tile (covers max tap offset)
    # w_ref   : (KH*KW, Cout, Cin_pad)  VMEM-resident taps (one (Cout,Cin) each)
    # b_ref   : (Cout, 1)               VMEM-resident bias
    # o_ref   : (1, Cout, TM)           lane-dense output tile
    # xcat_ref: (Cin_pad, TM+HALO)      scratch: contiguous window incl. halo

    # Assemble the contiguous window (both stores are lane-aligned: 0 and TM).
    xcat_ref[:cin, :tm] = x_ref[0]
    xcat_ref[:cin, tm:] = xh_ref[0]
    if cin_pad > cin:
        # Keep the channel-padding rows zero (scratch is not zero-initialized).
        xcat_ref[cin:, :] = jnp.zeros(
            (cin_pad - cin, xcat_ref.shape[1]), jnp.float32)

    # One small MXU matmul per (kh, kw) tap against a statically shifted window.
    acc = jnp.dot(w_ref[0], xcat_ref[:, 0:tm],
                  preferred_element_type=jnp.float32)
    for idx in range(1, len(offsets)):
        off = offsets[idx]
        acc = acc + jnp.dot(w_ref[idx], xcat_ref[:, off:off + tm],
                            preferred_element_type=jnp.float32)

    o_ref[0] = (acc + b_ref[...]).astype(o_ref.dtype)


def simple_conv2d(x, weight, bias, stride=1, padding=0, tm=8192):
    """Forward pass matching the PyTorch SimpleConv2d module.

    x:      (N, Cin, H, W)      float32
    weight: (Cout, Cin, KH, KW) float32
    bias:   (Cout,)             float32
    returns (N, Cout, OH, OW)   float32
    """
    stride = stride if isinstance(stride, tuple) else (stride, stride)
    SH, SW = stride
    N, Cin, H, W = x.shape
    Cout, _, KH, KW = weight.shape
    P = int(padding)

    OH = (H + 2 * P - KH) // SH + 1
    OW = (W + 2 * P - KW) // SW + 1

    Hp, Wp = H + 2 * P, W + 2 * P
    OHd = Hp - KH + 1          # dense (stride-1) output rows
    M = OHd * Wp               # dense output length per image (padded-width layout)

    # Static flat offsets of the KH*KW taps inside the flattened padded image.
    offsets = tuple(kh * Wp + kw for kh in range(KH) for kw in range(KW))
    max_off = offsets[-1]

    # Halo block (lane-aligned) and spatial tile (multiple of the halo block).
    halo_blk = max(128, _round_up(max_off, 128))
    m_cap = _round_up(M, halo_blk)
    tm = max(halo_blk, min(_round_up(int(tm), halo_blk), m_cap))
    n_tiles = _cdiv(M, tm)
    # v7x megacore: best-effort even total grid-step count (both axes parallel).
    if (N * n_tiles) % 2 == 1 and n_tiles > 1:
        tm2 = max(halo_blk, _round_up(_cdiv(M, n_tiles + 1), halo_blk))
        n2 = _cdiv(M, tm2)
        if (N * n2) % 2 == 0:
            tm, n_tiles = tm2, n2
    M_pad = n_tiles * tm
    L = M_pad + halo_blk               # always >= Hp*Wp (halo_blk >= (KH-1)*Wp)
    halo_ratio = tm // halo_blk
    cin_pad = _round_up(Cin, 8)

    # ---- glue (O(input) only): zero-pad, flatten per channel, pad flat tail --
    xp = jnp.pad(x.astype(jnp.float32), ((0, 0), (0, 0), (P, P), (P, P)))
    x_flat = xp.reshape(N, Cin, Hp * Wp)
    x_flat = jnp.pad(x_flat, ((0, 0), (0, 0), (0, L - Hp * Wp)))

    # Weights: one (Cout, Cin_pad) tap per (kh, kw), matching `offsets` order.
    w_taps = jnp.transpose(weight.astype(jnp.float32), (2, 3, 0, 1)).reshape(
        KH * KW, Cout, Cin)
    w_taps = jnp.pad(w_taps, ((0, 0), (0, 0), (0, cin_pad - Cin)))
    b_mat = bias.reshape(Cout, 1).astype(jnp.float32)

    # ---- VMEM budget: 2x(double-buffered tiles) + scratch + residents + slack.
    cout_p = _round_up(Cout, 8)
    x_tile_b = cin_pad * tm * 4
    halo_b = cin_pad * halo_blk * 4
    out_tile_b = cout_p * tm * 4
    scratch_b = cin_pad * (tm + halo_blk) * 4
    resident_b = (KH * KW * cout_p + cout_p) * 128 * 4
    vmem_limit = int(min(48 * 2**20,
                         2 * (x_tile_b + halo_b + out_tile_b)
                         + scratch_b + resident_b + (8 << 20)))

    kernel = functools.partial(_fused_conv_kernel, offsets=offsets, tm=tm,
                               cin=Cin, cin_pad=cin_pad)

    out_flat = pl.pallas_call(
        kernel,
        out_shape=jax.ShapeDtypeStruct((N, Cout, M_pad), jnp.float32),
        grid=(N, n_tiles),
        in_specs=[
            # Current flat-image tile (streamed, double-buffered).
            pl.BlockSpec((1, Cin, tm), lambda n, i: (n, 0, i)),
            # Small halo block just past the tile (same array, second operand).
            pl.BlockSpec((1, Cin, halo_blk),
                         lambda n, i: (n, 0, (i + 1) * halo_ratio)),
            # Weights / bias: constant index -> VMEM-resident across the grid.
            pl.BlockSpec((KH * KW, Cout, cin_pad), lambda n, i: (0, 0, 0)),
            pl.BlockSpec((Cout, 1), lambda n, i: (0, 0)),
        ],
        out_specs=pl.BlockSpec((1, Cout, tm), lambda n, i: (n, 0, i)),
        scratch_shapes=[pltpu.VMEM((cin_pad, tm + halo_blk), jnp.float32)],
        compiler_params=pltpu.CompilerParams(
            dimension_semantics=("parallel", "parallel"),
            vmem_limit_bytes=vmem_limit,
        ),
    )(x_flat, x_flat, w_taps, b_mat)

    # Small-output post-processing only (the 9x patch stream is gone):
    # padded-width dense layout -> crop garbage tail, subsample stride, crop W.
    out_dense = out_flat[:, :, :M].reshape(N, Cout, OHd, Wp)
    out = out_dense[:, :, ::SH, ::SW][:, :, :OH, :OW]
    return out


if __name__ == "__main__":
    # Module configuration (mirrors SimpleConv2d.__init__):
    in_channels, out_channels = 4, 8
    kernel_size, stride, padding = 3, 1, 1

    key = jax.random.PRNGKey(0)
    kx, kw = jax.random.split(key)

    # weight = randn(Cout, Cin, KH, KW) / sqrt(Cin*KH*KW); bias = zeros(Cout)
    fan_in = in_channels * kernel_size * kernel_size
    weight = (jax.random.normal(
        kw, (out_channels, in_channels, kernel_size, kernel_size),
        dtype=jnp.float32) / jnp.sqrt(jnp.float32(fan_in)))
    bias = jnp.zeros((out_channels,), dtype=jnp.float32)

    # Small NCHW input consistent with the forward pass.
    x = jax.random.normal(kx, (2, in_channels, 16, 16), dtype=jnp.float32)

    conv = jax.jit(lambda xx, ww, bb: simple_conv2d(
        xx, ww, bb, stride=stride, padding=padding))
    out = jax.block_until_ready(conv(x, weight, bias))

    # Cross-check against XLA's native conv (same semantics as the PyTorch loop).
    ref = jax.lax.conv_general_dilated(
        x, weight, window_strides=(stride, stride),
        padding=[(padding, padding), (padding, padding)],
        dimension_numbers=("NCHW", "OIHW", "NCHW"),
        precision=jax.lax.Precision.HIGHEST,
    ) + bias[None, :, None, None]
    assert out.shape == ref.shape == (2, out_channels, 16, 16)
    # Tolerance leaves margin for the MXU's default f32 (multi-pass bf16) path;
    # pass precision=HIGHEST inside the kernel dots if bit-tighter parity is needed.
    assert jnp.allclose(out, ref, atol=1e-3, rtol=1e-3), float(
        jnp.max(jnp.abs(out - ref)))

    print("KERNEL_OK")
</pallas_src>

<mosaic_0001>
module attributes {stable_mosaic.version = 11 : i64} {
  func.func @_fused_conv_kernel(%arg0: i32, %arg1: i32, %arg2: memref<1x4x384xf32, #tpu.memory_space<vmem>>, %arg3: memref<1x4x128xf32, #tpu.memory_space<vmem>>, %arg4: memref<9x8x8xf32, #tpu.memory_space<vmem>>, %arg5: memref<8x1xf32, #tpu.memory_space<vmem>>, %arg6: memref<1x8x384xf32, #tpu.memory_space<vmem>>, %arg7: memref<8x512xf32, #tpu.memory_space<vmem>>) attributes {dimension_semantics = [#tpu.dimension_semantics<parallel>, #tpu.dimension_semantics<parallel>], iteration_bounds = array<i64: 2, 1>, scalar_prefetch = 0 : i64, scratch_operands = 1 : i64, tpu.core_type = #tpu.core_type<tc>, window_params = [{transform_indices = @transform_0, window_bounds = array<i64: 1, 4, 384>}, {transform_indices = @transform_1, window_bounds = array<i64: 1, 4, 128>}, {pipeline_mode = #tpu.pipeline_mode<synchronous>, transform_indices = @transform_2, window_bounds = array<i64: 9, 8, 8>}, {pipeline_mode = #tpu.pipeline_mode<synchronous>, transform_indices = @transform_3, window_bounds = array<i64: 8, 1>}, {transform_indices = @transform_4, window_bounds = array<i64: 1, 8, 384>}]} {
    %c0 = arith.constant 0 : index
    %c0_0 = arith.constant 0 : index
    %c0_1 = arith.constant 0 : index
    %0 = vector.load %arg2[%c0, %c0_0, %c0_1] : memref<1x4x384xf32, #tpu.memory_space<vmem>>, vector<1x4x384xf32>
    %1 = vector.shape_cast %0 : vector<1x4x384xf32> to vector<4x384xf32>
    %c0_2 = arith.constant 0 : index
    %c0_3 = arith.constant 0 : index
    %2 = vector.load %arg7[%c0_2, %c0_3] : memref<8x512xf32, #tpu.memory_space<vmem>>, vector<4x384xf32>
    tpu.vector_store %arg7[%c0_2, %c0_3], %1 {strides = array<i32>} : memref<8x512xf32, #tpu.memory_space<vmem>>, vector<4x384xf32>,
    %c0_4 = arith.constant 0 : index
    %c0_5 = arith.constant 0 : index
    %c0_6 = arith.constant 0 : index
    %3 = vector.load %arg3[%c0_4, %c0_5, %c0_6] : memref<1x4x128xf32, #tpu.memory_space<vmem>>, vector<1x4x128xf32>
    %4 = vector.shape_cast %3 : vector<1x4x128xf32> to vector<4x128xf32>
    %c0_7 = arith.constant 0 : index
    %c384 = arith.constant 384 : index
    %5 = vector.load %arg7[%c0_7, %c384] : memref<8x512xf32, #tpu.memory_space<vmem>>, vector<4x128xf32>
    tpu.vector_store %arg7[%c0_7, %c384], %4 {strides = array<i32>} : memref<8x512xf32, #tpu.memory_space<vmem>>, vector<4x128xf32>,
    %cst = arith.constant 0.000000e+00 : f32
    %6 = vector.broadcast %cst : f32 to vector<4x512xf32>
    %c4 = arith.constant 4 : index
    %c0_8 = arith.constant 0 : index
    %7 = vector.load %arg7[%c4, %c0_8] : memref<8x512xf32, #tpu.memory_space<vmem>>, vector<4x512xf32>
    tpu.vector_store %arg7[%c4, %c0_8], %6 {strides = array<i32>} : memref<8x512xf32, #tpu.memory_space<vmem>>, vector<4x512xf32>,
    %c0_9 = arith.constant 0 : index
    %c0_10 = arith.constant 0 : index
    %c0_11 = arith.constant 0 : index
    %8 = vector.load %arg4[%c0_9, %c0_10, %c0_11] : memref<9x8x8xf32, #tpu.memory_space<vmem>>, vector<1x8x8xf32>
    %9 = vector.shape_cast %8 : vector<1x8x8xf32> to vector<8x8xf32>
    %c0_12 = arith.constant 0 : index
    %c0_13 = arith.constant 0 : index
    %10 = vector.load %arg7[%c0_12, %c0_13] : memref<8x512xf32, #tpu.memory_space<vmem>>, vector<8x384xf32>
    %cst_14 = arith.constant dense<0.000000e+00> : vector<8x384xf32>
    %11 = tpu.matmul %9, %10, %cst_14 {dimension_numbers = #tpu.dot_dimension_numbers<[1], [0], [0], [1], [0, 0, 1, 1], [], []>} : vector<8x8xf32>, vector<8x384xf32>, vector<8x384xf32> -> vector<8x384xf32>
    %c1 = arith.constant 1 : index
    %c0_15 = arith.constant 0 : index
    %c0_16 = arith.constant 0 : index
    %12 = vector.load %arg4[%c1, %c0_15, %c0_16] : memref<9x8x8xf32, #tpu.memory_space<vmem>>, vector<1x8x8xf32>
    %13 = vector.shape_cast %12 : vector<1x8x8xf32> to vector<8x8xf32>
    %c0_17 = arith.constant 0 : index
    %c1_18 = arith.constant 1 : index
    %14 = vector.load %arg7[%c0_17, %c1_18] : memref<8x512xf32, #tpu.memory_space<vmem>>, vector<8x384xf32>
    %cst_19 = arith.constant dense<0.000000e+00> : vector<8x384xf32>
    %15 = tpu.matmul %13, %14, %cst_19 {dimension_numbers = #tpu.dot_dimension_numbers<[1], [0], [0], [1], [0, 0, 1, 1], [], []>} : vector<8x8xf32>, vector<8x384xf32>, vector<8x384xf32> -> vector<8x384xf32>
    %16 = arith.addf %11, %15 : vector<8x384xf32>
    %c2 = arith.constant 2 : index
    %c0_20 = arith.constant 0 : index
    %c0_21 = arith.constant 0 : index
    %17 = vector.load %arg4[%c2, %c0_20, %c0_21] : memref<9x8x8xf32, #tpu.memory_space<vmem>>, vector<1x8x8xf32>
    %18 = vector.shape_cast %17 : vector<1x8x8xf32> to vector<8x8xf32>
    %c0_22 = arith.constant 0 : index
    %c2_23 = arith.constant 2 : index
    %19 = vector.load %arg7[%c0_22, %c2_23] : memref<8x512xf32, #tpu.memory_space<vmem>>, vector<8x384xf32>
    %cst_24 = arith.constant dense<0.000000e+00> : vector<8x384xf32>
    %20 = tpu.matmul %18, %19, %cst_24 {dimension_numbers = #tpu.dot_dimension_numbers<[1], [0], [0], [1], [0, 0, 1, 1], [], []>} : vector<8x8xf32>, vector<8x384xf32>, vector<8x384xf32> -> vector<8x384xf32>
    %21 = arith.addf %16, %20 : vector<8x384xf32>
    %c3 = arith.constant 3 : index
    %c0_25 = arith.constant 0 : index
    %c0_26 = arith.constant 0 : index
    %22 = vector.load %arg4[%c3, %c0_25, %c0_26] : memref<9x8x8xf32, #tpu.memory_space<vmem>>, vector<1x8x8xf32>
    %23 = vector.shape_cast %22 : vector<1x8x8xf32> to vector<8x8xf32>
    %c0_27 = arith.constant 0 : index
    %c18 = arith.constant 18 : index
    %24 = vector.load %arg7[%c0_27, %c18] : memref<8x512xf32, #tpu.memory_space<vmem>>, vector<8x384xf32>
    %cst_28 = arith.constant dense<0.000000e+00> : vector<8x384xf32>
    %25 = tpu.matmul %23, %24, %cst_28 {dimension_numbers = #tpu.dot_dimension_numbers<[1], [0], [0], [1], [0, 0, 1, 1], [], []>} : vector<8x8xf32>, vector<8x384xf32>, vector<8x384xf32> -> vector<8x384xf32>
    %26 = arith.addf %21, %25 : vector<8x384xf32>
    %c4_29 = arith.constant 4 : index
    %c0_30 = arith.constant 0 : index
    %c0_31 = arith.constant 0 : index
    %27 = vector.load %arg4[%c4_29, %c0_30, %c0_31] : memref<9x8x8xf32, #tpu.memory_space<vmem>>, vector<1x8x8xf32>
    %28 = vector.shape_cast %27 : vector<1x8x8xf32> to vector<8x8xf32>
    %c0_32 = arith.constant 0 : index
    %c19 = arith.constant 19 : index
    %29 = vector.load %arg7[%c0_32, %c19] : memref<8x512xf32, #tpu.memory_space<vmem>>, vector<8x384xf32>
    %cst_33 = arith.constant dense<0.000000e+00> : vector<8x384xf32>
    %30 = tpu.matmul %28, %29, %cst_33 {dimension_numbers = #tpu.dot_dimension_numbers<[1], [0], [0], [1], [0, 0, 1, 1], [], []>} : vector<8x8xf32>, vector<8x384xf32>, vector<8x384xf32> -> vector<8x384xf32>
    %31 = arith.addf %26, %30 : vector<8x384xf32>
    %c5 = arith.constant 5 : index
    %c0_34 = arith.constant 0 : index
    %c0_35 = arith.constant 0 : index
    %32 = vector.load %arg4[%c5, %c0_34, %c0_35] : memref<9x8x8xf32, #tpu.memory_space<vmem>>, vector<1x8x8xf32>
    %33 = vector.shape_cast %32 : vector<1x8x8xf32> to vector<8x8xf32>
    %c0_36 = arith.constant 0 : index
    %c20 = arith.constant 20 : index
    %34 = vector.load %arg7[%c0_36, %c20] : memref<8x512xf32, #tpu.memory_space<vmem>>, vector<8x384xf32>
    %cst_37 = arith.constant dense<0.000000e+00> : vector<8x384xf32>
    %35 = tpu.matmul %33, %34, %cst_37 {dimension_numbers = #tpu.dot_dimension_numbers<[1], [0], [0], [1], [0, 0, 1, 1], [], []>} : vector<8x8xf32>, vector<8x384xf32>, vector<8x384xf32> -> vector<8x384xf32>
    %36 = arith.addf %31, %35 : vector<8x384xf32>
    %c6 = arith.constant 6 : index
    %c0_38 = arith.constant 0 : index
    %c0_39 = arith.constant 0 : index
    %37 = vector.load %arg4[%c6, %c0_38, %c0_39] : memref<9x8x8xf32, #tpu.memory_space<vmem>>, vector<1x8x8xf32>
    %38 = vector.shape_cast %37 : vector<1x8x8xf32> to vector<8x8xf32>
    %c0_40 = arith.constant 0 : index
    %c36 = arith.constant 36 : index
    %39 = vector.load %arg7[%c0_40, %c36] : memref<8x512xf32, #tpu.memory_space<vmem>>, vector<8x384xf32>
    %cst_41 = arith.constant dense<0.000000e+00> : vector<8x384xf32>
    %40 = tpu.matmul %38, %39, %cst_41 {dimension_numbers = #tpu.dot_dimension_numbers<[1], [0], [0], [1], [0, 0, 1, 1], [], []>} : vector<8x8xf32>, vector<8x384xf32>, vector<8x384xf32> -> vector<8x384xf32>
    %41 = arith.addf %36, %40 : vector<8x384xf32>
    %c7 = arith.constant 7 : index
    %c0_42 = arith.constant 0 : index
    %c0_43 = arith.constant 0 : index
    %42 = vector.load %arg4[%c7, %c0_42, %c0_43] : memref<9x8x8xf32, #tpu.memory_space<vmem>>, vector<1x8x8xf32>
    %43 = vector.shape_cast %42 : vector<1x8x8xf32> to vector<8x8xf32>
    %c0_44 = arith.constant 0 : index
    %c37 = arith.constant 37 : index
    %44 = vector.load %arg7[%c0_44, %c37] : memref<8x512xf32, #tpu.memory_space<vmem>>, vector<8x384xf32>
    %cst_45 = arith.constant dense<0.000000e+00> : vector<8x384xf32>
    %45 = tpu.matmul %43, %44, %cst_45 {dimension_numbers = #tpu.dot_dimension_numbers<[1], [0], [0], [1], [0, 0, 1, 1], [], []>} : vector<8x8xf32>, vector<8x384xf32>, vector<8x384xf32> -> vector<8x384xf32>
    %46 = arith.addf %41, %45 : vector<8x384xf32>
    %c8 = arith.constant 8 : index
    %c0_46 = arith.constant 0 : index
    %c0_47 = arith.constant 0 : index
    %47 = vector.load %arg4[%c8, %c0_46, %c0_47] : memref<9x8x8xf32, #tpu.memory_space<vmem>>, vector<1x8x8xf32>
    %48 = vector.shape_cast %47 : vector<1x8x8xf32> to vector<8x8xf32>
    %c0_48 = arith.constant 0 : index
    %c38 = arith.constant 38 : index
    %49 = vector.load %arg7[%c0_48, %c38] : memref<8x512xf32, #tpu.memory_space<vmem>>, vector<8x384xf32>
    %cst_49 = arith.constant dense<0.000000e+00> : vector<8x384xf32>
    %50 = tpu.matmul %48, %49, %cst_49 {dimension_numbers = #tpu.dot_dimension_numbers<[1], [0], [0], [1], [0, 0, 1, 1], [], []>} : vector<8x8xf32>, vector<8x384xf32>, vector<8x384xf32> -> vector<8x384xf32>
    %51 = arith.addf %46, %50 : vector<8x384xf32>
    %c0_50 = arith.constant 0 : index
    %c0_51 = arith.constant 0 : index
    %52 = vector.load %arg5[%c0_50, %c0_51] : memref<8x1xf32, #tpu.memory_space<vmem>>, vector<8x1xf32>
    %53 = vector.broadcast %52 : vector<8x1xf32> to vector<8x384xf32>
    %54 = arith.addf %51, %53 : vector<8x384xf32>
    %c0_52 = arith.constant 0 : index
    %c0_53 = arith.constant 0 : index
    %c0_54 = arith.constant 0 : index
    %55 = vector.load %arg6[%c0_52, %c0_53, %c0_54] : memref<1x8x384xf32, #tpu.memory_space<vmem>>, vector<1x8x384xf32>
    %56 = vector.shape_cast %55 : vector<1x8x384xf32> to vector<8x384xf32>
    %57 = vector.shape_cast %54 : vector<8x384xf32> to vector<1x8x384xf32>
    tpu.vector_store %arg6[%c0_52, %c0_53, %c0_54], %57 {strides = array<i32>} : memref<1x8x384xf32, #tpu.memory_space<vmem>>, vector<1x8x384xf32>,
    return
  }
  func.func @transform_0(%arg0: i32, %arg1: i32) -> (i32, i32, i32) {
    %c0_i32 = arith.constant 0 : i32
    %c0_i32_0 = arith.constant 0 : i32
    return %arg0, %c0_i32, %arg1 : i32, i32, i32
  }
  func.func @transform_1(%arg0: i32, %arg1: i32) -> (i32, i32, i32) {
    %c1_i32 = arith.constant 1 : i32
    %0 = arith.addi %arg1, %c1_i32 : i32
    %c3_i32 = arith.constant 3 : i32
    %1 = arith.muli %0, %c3_i32 : i32
    %c0_i32 = arith.constant 0 : i32
    %c0_i32_0 = arith.constant 0 : i32
    return %arg0, %c0_i32, %1 : i32, i32, i32
  }
  func.func @transform_2(%arg0: i32, %arg1: i32) -> (i32, i32, i32) {
    %c0_i32 = arith.constant 0 : i32
    %c0_i32_0 = arith.constant 0 : i32
    %c0_i32_1 = arith.constant 0 : i32
    %c0_i32_2 = arith.constant 0 : i32
    return %c0_i32, %c0_i32_0, %c0_i32_1 : i32, i32, i32
  }
  func.func @transform_3(%arg0: i32, %arg1: i32) -> (i32, i32) {
    %c0_i32 = arith.constant 0 : i32
    %c0_i32_0 = arith.constant 0 : i32
    %c0_i32_1 = arith.constant 0 : i32
    return %c0_i32, %c0_i32_0 : i32, i32
  }
  func.func @transform_4(%arg0: i32, %arg1: i32) -> (i32, i32, i32) {
    %c0_i32 = arith.constant 0 : i32
    %c0_i32_0 = arith.constant 0 : i32
    return %arg0, %c0_i32, %arg1 : i32, i32, i32
  }
}

</mosaic_0001>

<llo_original>
// kernel: _lambda_.1
$region0: #{_lambda_.1}
  #allocation0 [shape = 'u32[]', space=smem, size = 0x4, offset = 0x4, fixed_abs, tag = 'smem constant byte address 0x4 - core index']
  #allocation1 [shape = 'u32[144,128]{1,0:T(1,128)}', space=vmem, size = 0x12000, scoped, tag = 'internal scratch']
  #allocation2 [shape = 'f32[8,512]{1,0:T(8,128)}', space=vmem, size = 0x4000, scoped, tag = 'scratch operand']
  %s0 = inlined_call_operand.vmem [shape: f32[2,4,512], index: 0, kind: input, shape index: {}, may-alias: {0,1}]
  %s1 = inlined_call_operand.vmem [shape: f32[2,4,512], index: 1, kind: input, shape index: {}, may-alias: {0,1}]
  %s2 = inlined_call_operand.vmem [shape: f32[9,8,8], index: 2, kind: input, shape index: {}]
  %s3 = inlined_call_operand.vmem [shape: f32[8,1], index: 3, kind: input, shape index: {}]
  %s4 = inlined_call_operand.vmem [shape: f32[2,8,384], index: 4, kind: output, shape index: {}]
  %s5 = sld [smem:[#allocation0]]
  $region49: #{_lambda_.1} parent=0
    _
  %s7 = ssub.s32 1, %s5
  %s8 = scalar_select 0, %s7, %s5
  loop: start=0, step=1, limit=4
  $region2: #{_lambda_.1} parent=0 // loop_pre_header
    _
  $region3: #{_lambda_.1} parent=0 // loop_header
    %s10 = sphi 0, %s14
    %p11 = scmp.ge.s32.totalorder %s10, 4
    %s17 = sphi 0, %s29
    %s18 = sphi 0, %s25
    %s19 = sphi 0, %s17
    %s20 = sphi 0, %s18
    %s21 = sphi 0, %s19
    %s22 = sphi 0, %s20
    %s34 = sphi 0, %s36
    %s37 = sphi 0, %s34
    %s38 = sphi 0, %s37
    %s54 = sphi 0, %s38
    %s66 = sphi 0, %s68
    %s69 = sphi 0, %s66
    %s70 = sphi 0, %s69
    %s86 = sphi 0, %s70
    %s90 = sphi 0, %s90
    %s92 = sphi 0, %s90
    %s93 = sphi 0, %s92
    %s107 = sphi 0, %s93
    %s111 = sphi 0, %s111
    %s113 = sphi 0, %s111
    %s114 = sphi 0, %s113
    %s128 = sphi 0, %s114
    %s136 = sphi 0, %s138
    %s139 = sphi 0, %s136
    %s140 = sphi 0, %s139
    %s156 = sphi 0, %s140
  $region4: #{_lambda_.1} parent=0 // loop_header_branch
    %13 = sbr.rel (%p11) target = $region8
  $region5: #{_lambda_.1} parent=0 // loop_body
    %s15 = ssub.s32 %s10, 1
    %s16 = ssub.s32 %s10, 2
    %s23 = sadd.s32 1, %s18
    %p24 = scmp.ge.s32.totalorder %s23, 1
    %s25 = scalar_select %p24, 0, %s23
    %s26 = sadd.s32 1, %s17
    %s27 = scalar_select %p24, %s26, %s17
    %p28 = scmp.ge.s32.totalorder %s27, 2
    %s29 = scalar_select %p28, 0, %s27
    %s30 = ssub.s32 %s17, %s29
    %s31 = ssub.s32 %s18, %s25
    %s32 = sor.u32 %s30, %s31
    %p33 = scmp.eq.s32.totalorder %s32, 0
    %s35 = sadd.s32 %s34, 1
    %s36 = scalar_select %p33, %s34, %s35
    %p39 = pneg %p33
    %p40 = scmp.eq.s32.totalorder %s10, 1
    %p41 = por %p39, %p40
    %p42 = scmp.ne.s32.totalorder %s34, %s37
    %p43 = scmp.eq.s32.totalorder %s10, 0
    %p44 = por %p42, %p43
    %p45 = scmp.ne.s32.totalorder %s34, %s37
    %p46 = scmp.eq.s32.totalorder %s15, 1
    %p47 = por %p45, %p46
    %p48 = scmp.ne.s32.totalorder %s37, %s38
    %p49 = scmp.eq.s32.totalorder %s15, 0
    %p50 = por %p48, %p49
    %p51 = scmp.ne.s32.totalorder %s37, %s38
    %p52 = scmp.eq.s32.totalorder %s16, 1
    %p53 = por %p51, %p52
    %p55 = scmp.ne.s32.totalorder %s38, %s54
    %p56 = scmp.eq.s32.totalorder %s16, 0
    %p57 = por %p55, %p56
    %s58 = sadd.s32 %s18, 1
    %s59 = smul.u32 %s58, 3
    %s60 = sadd.s32 %s25, 1
    %s61 = smul.u32 %s60, 3
    %s62 = ssub.s32 %s17, %s29
    %s63 = ssub.s32 %s59, %s61
    %s64 = sor.u32 %s62, %s63
    %p65 = scmp.eq.s32.totalorder %s64, 0
    %s67 = sadd.s32 %s66, 1
    %s68 = scalar_select %p65, %s66, %s67
    %p71 = pneg %p65
    %p72 = scmp.eq.s32.totalorder %s10, 1
    %p73 = por %p71, %p72
    %p74 = scmp.ne.s32.totalorder %s66, %s69
    %p75 = scmp.eq.s32.totalorder %s10, 0
    %p76 = por %p74, %p75
    %p77 = scmp.ne.s32.totalorder %s66, %s69
    %p78 = scmp.eq.s32.totalorder %s15, 1
    %p79 = por %p77, %p78
    %p80 = scmp.ne.s32.totalorder %s69, %s70
    %p81 = scmp.eq.s32.totalorder %s15, 0
    %p82 = por %p80, %p81
    %p83 = scmp.ne.s32.totalorder %s69, %s70
    %p84 = scmp.eq.s32.totalorder %s16, 1
    %p85 = por %p83, %p84
    %p87 = scmp.ne.s32.totalorder %s70, %s86
    %p88 = scmp.eq.s32.totalorder %s16, 0
    %p89 = por %p87, %p88
    %s91 = sadd.s32 %s90, 1
    %p94 = scmp.eq.s32.totalorder %s10, 1
    %p95 = scmp.ne.s32.totalorder %s90, %s92
    %p96 = scmp.eq.s32.totalorder %s10, 0
    %p97 = por %p95, %p96
    %p98 = scmp.ne.s32.totalorder %s90, %s92
    %p99 = scmp.eq.s32.totalorder %s15, 1
    %p100 = por %p98, %p99
    %p101 = scmp.ne.s32.totalorder %s92, %s93
    %p102 = scmp.eq.s32.totalorder %s15, 0
    %p103 = por %p101, %p102
    %p104 = scmp.ne.s32.totalorder %s92, %s93
    %p105 = scmp.eq.s32.totalorder %s16, 1
    %p106 = por %p104, %p105
    %p108 = scmp.ne.s32.totalorder %s93, %s107
    %p109 = scmp.eq.s32.totalorder %s16, 0
    %p110 = por %p108, %p109
    %s112 = sadd.s32 %s111, 1
    %p115 = scmp.eq.s32.totalorder %s10, 1
    %p116 = scmp.ne.s32.totalorder %s111, %s113
    %p117 = scmp.eq.s32.totalorder %s10, 0
    %p118 = por %p116, %p117
    %p119 = scmp.ne.s32.totalorder %s111, %s113
    %p120 = scmp.eq.s32.totalorder %s15, 1
    %p121 = por %p119, %p120
    %p122 = scmp.ne.s32.totalorder %s113, %s114
    %p123 = scmp.eq.s32.totalorder %s15, 0
    %p124 = por %p122, %p123
    %p125 = scmp.ne.s32.totalorder %s113, %s114
    %p126 = scmp.eq.s32.totalorder %s16, 1
    %p127 = por %p125, %p126
    %p129 = scmp.ne.s32.totalorder %s114, %s128
    %p130 = scmp.eq.s32.totalorder %s16, 0
    %p131 = por %p129, %p130
    %s132 = ssub.s32 %s17, %s29
    %s133 = ssub.s32 %s18, %s25
    %s134 = sor.u32 %s132, %s133
    %p135 = scmp.eq.s32.totalorder %s134, 0
    %s137 = sadd.s32 %s136, 1
    %s138 = scalar_select %p135, %s136, %s137
    %p141 = pneg %p135
    %p142 = scmp.eq.s32.totalorder %s10, 1
    %p143 = por %p141, %p142
    %p144 = scmp.ne.s32.totalorder %s136, %s139
    %p145 = scmp.eq.s32.totalorder %s10, 0
    %p146 = por %p144, %p145
    %p147 = scmp.ne.s32.totalorder %s136, %s139
    %p148 = scmp.eq.s32.totalorder %s15, 1
    %p149 = por %p147, %p148
    %p150 = scmp.ne.s32.totalorder %s139, %s140
    %p151 = scmp.eq.s32.totalorder %s15, 0
    %p152 = por %p150, %p151
    %p153 = scmp.ne.s32.totalorder %s139, %s140
    %p154 = scmp.eq.s32.totalorder %s16, 1
    %p155 = por %p153, %p154
    %p157 = scmp.ne.s32.totalorder %s140, %s156
    %p158 = scmp.eq.s32.totalorder %s16, 0
    %p159 = por %p157, %p158
    %p160 = scmp.le.s32.totalorder 1, %s10
    %p161 = scmp.lt.s32.totalorder %s10, 3
    %p162 = pnand %p160, %p161
    %p163 = pneg %p162
    // Predicated region
    $region9: #{_lambda_.1} parent=5 // pred_check
      _
    $region10: #{_lambda_.1} parent=5 // pred_check_branch
      %165 = sbr.rel (%p162) target = $region12
    $region11: #{_lambda_.1} parent=5 // pred_region
      %s166 = ssub.s32 %s10, 1
      // Predicated region
      $region13: #{_lambda_.1} parent=11 // pred_check
        %p167 = pneg %p103
      $region14: #{_lambda_.1} parent=11 // pred_check_branch
        %169 = sbr.rel (%p167) target = $region16
      $region15: #{_lambda_.1} parent=11 // pred_region
        _
      $region16: #{_lambda_.1} parent=11 // pred_fallthru
        _
      // Predicated region
      $region17: #{_lambda_.1} parent=11 // pred_check
        %p170 = pneg %p124
      $region18: #{_lambda_.1} parent=11 // pred_check_branch
        %172 = sbr.rel (%p170) target = $region20
      $region19: #{_lambda_.1} parent=11 // pred_region
        _
      $region20: #{_lambda_.1} parent=11 // pred_fallthru
        _
    $region12: #{_lambda_.1} parent=5 // pred_fallthru
      _
    %p173 = scmp.lt.s32.totalorder %s10, 2
    // Predicated region
    $region21: #{_lambda_.1} parent=5 // pred_check
      %p174 = pneg %p173
    $region22: #{_lambda_.1} parent=5 // pred_check_branch
      %176 = sbr.rel (%p174) target = $region24
    $region23: #{_lambda_.1} parent=5 // pred_region
      // Predicated region
      $region25: #{_lambda_.1} parent=23 // pred_check
        %p177 = pneg %p44
      $region26: #{_lambda_.1} parent=23 // pred_check_branch
        %179 = sbr.rel (%p177) target = $region28
      $region27: #{_lambda_.1} parent=23 // pred_region
        %s180 = smul.u32 3, %s18
        %s181 = ssub.s32 4, %s180
        %p182 = scmp.lt.s32.totalorder %s181, 3
        %s183 = scalar_select %p182, %s181, 3
        %s184 = smul.u32 64, %s183
        %p185 = scmp.lt.s32.totalorder %s17, 1
        %s186 = scalar_select %p185, %s17, 1
        %p187 = scmp.lt.s32.totalorder %s180, 3
        %s188 = scalar_select %p187, %s180, 3
        %s189 = smul.addr %s186, 4
        %s190 = sadd.s32 %s188, %s189
        %s191 = smul.addr %s190, 4
        %s192 = scalar_lea.vmem %s0, %s191
        %s193 = smul.u32 3, %s18
        %s194 = ssub.s32 4, %s193
        %p195 = scmp.lt.s32.totalorder %s194, 3
        %s196 = scalar_select %p195, %s194, 3
        %s197 = smul.u32 64, %s196
      $region28: #{_lambda_.1} parent=23 // pred_fallthru
        _
      // Predicated region
      $region29: #{_lambda_.1} parent=23 // pred_check
        %p198 = pneg %p76
      $region30: #{_lambda_.1} parent=23 // pred_check_branch
        %200 = sbr.rel (%p198) target = $region32
      $region31: #{_lambda_.1} parent=23 // pred_region
        %s201 = sadd.s32 %s18, 1
        %s202 = smul.u32 %s201, 3
        %p203 = scmp.lt.s32.totalorder %s17, 1
        %s204 = scalar_select %p203, %s17, 1
        %p205 = scmp.lt.s32.totalorder %s202, 3
        %s206 = scalar_select %p205, %s202, 3
        %s207 = smul.addr %s204, 4
        %s208 = sadd.s32 %s206, %s207
        %s209 = smul.addr %s208, 4
        %s210 = scalar_lea.vmem %s1, %s209
        %s211 = sadd.s32 %s18, 1
        %s212 = smul.u32 %s211, 3
      $region32: #{_lambda_.1} parent=23 // pred_fallthru
        _
    $region24: #{_lambda_.1} parent=5 // pred_fallthru
      _
    %p213 = scmp.le.s32.totalorder 1, %s10
    %p214 = scmp.lt.s32.totalorder %s10, 3
    %p215 = pnand %p213, %p214
    %p216 = pneg %p215
    // Predicated region
    $region33: #{_lambda_.1} parent=5 // pred_check
      _
    $region34: #{_lambda_.1} parent=5 // pred_check_branch
      %218 = sbr.rel (%p215) target = $region36
    $region35: #{_lambda_.1} parent=5 // pred_region
      %s219 = ssub.s32 %s10, 1
      %s220 = smul.u32 3, %s20
      %s221 = ssub.s32 4, %s220
      %p222 = scmp.lt.s32.totalorder %s221, 3
      %s223 = scalar_select %p222, %s221, 3
      %s224 = smul.u32 64, %s223
      %p225 = scmp.lt.s32.totalorder %s19, 1
      %s226 = scalar_select %p225, %s19, 1
      %p227 = scmp.lt.s32.totalorder %s220, 3
      %s228 = scalar_select %p227, %s220, 3
      %s229 = smul.addr %s226, 4
      %s230 = sadd.s32 %s228, %s229
      %s231 = smul.addr %s230, 4
      %s232 = scalar_lea.vmem %s0, %s231
      %p233 = pneg %p50
      %p234 = pneg %p47
      %s235 = sadd.s32 %s20, 1
      %s236 = smul.u32 %s235, 3
      %p237 = scmp.lt.s32.totalorder %s19, 1
      %s238 = scalar_select %p237, %s19, 1
      %p239 = scmp.lt.s32.totalorder %s236, 3
      %s240 = scalar_select %p239, %s236, 3
      %s241 = smul.addr %s238, 4
      %s242 = sadd.s32 %s240, %s241
      %s243 = smul.addr %s242, 4
      %s244 = scalar_lea.vmem %s1, %s243
      %p245 = pneg %p82
      %p246 = pneg %p79
      %p247 = pneg %p103
      %p248 = pneg %p100
      %p249 = pneg %p124
      %p250 = pneg %p121
      %p251 = pneg %p152
      %p252 = pneg %p149
      %s253 = smul.u32 3, %s20
      %p254 = scmp.lt.s32.totalorder %s19, 1
      %s255 = scalar_select %p254, %s19, 1
      %p256 = scmp.lt.s32.totalorder %s253, 2
      %s257 = scalar_select %p256, %s253, 2
      %s258 = smul.addr %s255, 3
      %s259 = sadd.s32 %s257, %s258
      %s260 = smul.addr %s259, 8
      %s261 = scalar_lea.vmem %s4, %s260
      %s262 = smul.u32 3, %s20
      %s263 = ssub.s32 4, %s262
      %p264 = scmp.lt.s32.totalorder %s263, 3
      %s265 = scalar_select %p264, %s263, 3
      %s266 = smul.u32 64, %s265
      %p267 = scmp.lt.s32.totalorder %s19, 1
      %s268 = scalar_select %p267, %s19, 1
      %p269 = scmp.lt.s32.totalorder %s262, 3
      %s270 = scalar_select %p269, %s262, 3
      %s271 = smul.addr %s268, 4
      %s272 = sadd.s32 %s270, %s271
      %s273 = smul.addr %s272, 4
      %s274 = scalar_lea.vmem %s0, %s273
      %s275 = smul.u32 3, %s20
      %s276 = ssub.s32 4, %s275
      %p277 = scmp.lt.s32.totalorder %s276, 3
      %s278 = scalar_select %p277, %s276, 3
      %s279 = smul.u32 64, %s278
      %s280 = sadd.s32 %s20, 1
      %s281 = smul.u32 %s280, 3
      %p282 = scmp.lt.s32.totalorder %s19, 1
      %s283 = scalar_select %p282, %s19, 1
      %p284 = scmp.lt.s32.totalorder %s281, 3
      %s285 = scalar_select %p284, %s281, 3
      %s286 = smul.addr %s283, 4
      %s287 = sadd.s32 %s285, %s286
      %s288 = smul.addr %s287, 4
      %s289 = scalar_lea.vmem %s1, %s288
      %s290 = sadd.s32 %s20, 1
      %s291 = smul.u32 %s290, 3
      %s292 = smul.u32 3, %s20
      %p293 = scmp.lt.s32.totalorder %s19, 1
      %s294 = scalar_select %p293, %s19, 1
      %p295 = scmp.lt.s32.totalorder %s292, 2
      %s296 = scalar_select %p295, %s292, 2
      %s297 = smul.addr %s294, 3
      %s298 = sadd.s32 %s296, %s297
      %s299 = smul.addr %s298, 8
      %s300 = scalar_lea.vmem %s4, %s299
      %s301 = smul.u32 3, %s20
      %v302 = vld [vmem:[%s274] sm:$0xff]
      %v303 = vld [vmem:[%s274 + $0x8] sm:$0xf]
      %v305 = vcombine.high %v302, %v302
      %307 = vst [vmem:[#allocation2] sm:$0xf] %v302
      %308 = vst [vmem:[#allocation2 + $0x8] sm:$0xf] %v305
      %309 = vst [vmem:[#allocation2 + $0x10] sm:$0xf] %v303
      %v310 = vld [vmem:[%s289] sm:$0xf]
      %311 = vst [vmem:[#allocation2 + $0x18] sm:$0xf] %v310
      %312 = vst [vmem:[#allocation2] sm:$0xf0] 0.0
      %313 = vst [vmem:[#allocation2 + $0x8] sm:$0xf0] 0.0
      %314 = vst [vmem:[#allocation2 + $0x10] sm:$0xf0] 0.0
      %315 = vst [vmem:[#allocation2 + $0x18] sm:$0xf0] 0.0
      %v316 = vld [vmem:[%s2] sm:$0xff]
      %v317 = vld [vmem:[#allocation2] sm:$0xff]
      %v318 = vld [vmem:[#allocation2 + $0x8] sm:$0xff]
      %v319 = vld [vmem:[#allocation2 + $0x10] sm:$0xff]
      %s320 = scalar_lea.vmem %s2, 8
      %v321 = vld [vmem:[%s320] sm:$0xff]
      %v322 = vld [vmem:[#allocation2] sm:$0xff]
      %v323 = vld [vmem:[#allocation2 + $0x8] sm:$0xff]
      %v324 = vld [vmem:[#allocation2 + $0x10] sm:$0xff]
      %v325 = vld [vmem:[#allocation2 + $0x18] sm:$0xff]
      %330 = vrot.lane.b32.xlu0 %v322, 127
      %v331 = vpop.permute.xlu0 %330
      %332 = vrot.lane.b32.xlu0 %v323, 127
      %v333 = vpop.permute.xlu0 %332
      %334 = vrot.lane.b32.xlu0 %v324, 127
      %v335 = vpop.permute.xlu0 %334
      %336 = vrot.lane.b32.xlu0 %v325, 127
      %v337 = vpop.permute.xlu0 %336
      %vm338 = vcmask 1039360
      %v339 = vsel %vm338, %v331, %v333
      %v340 = vsel %vm338, %v333, %v335
      %v341 = vsel %vm338, %v335, %v337
      %vm345 = vcmask 64512
      %v347 = vsel %vm345, %v321, 0
      %349 = vmatprep.subr.mxu0 %v340
      %350 = vmatpush1.msra.mxu0 %v339
      %351 = vmatprep.subr.mxu0 0.0
      %352 = vmatpush1.msra.mxu0 0.0
      %353 = vmatprep.subr.mxu0 0.0
      %354 = vmatpush1.msra.mxu0 0.0
      %355 = vmatprep.subr.mxu0 0.0
      %356 = vmatpush1.msra.mxu0 0.0
      %357 = vmatprep.subr.mxu0 0.0
      %358 = vmatpush1.msra.mxu0 0.0
      %359 = vmatprep.subr.mxu0 0.0
      %360 = vmatpush1.msra.mxu0 0.0
      %361 = vmatprep.subr.mxu0 0.0
      %362 = vmatpush1.msra.mxu0 0.0
      %363 = vmatprep.subr.mxu0 0.0
      %364 = vmatpush1.msra.mxu0 0.0
      %365 = vmatprep.subr.mxu0 0.0
      %366 = vmatpush1.msra.mxu0 0.0
      %367 = vmatprep.subr.mxu0 0.0
      %368 = vmatpush1.msra.mxu0 0.0
      %369 = vmatprep.subr.mxu0 0.0
      %370 = vmatpush1.msra.mxu0 0.0
      %371 = vmatprep.subr.mxu0 0.0
      %372 = vmatpush1.msra.mxu0 0.0
      %373 = vmatprep.subr.mxu0 0.0
      %374 = vmatpush1.msra.mxu0 0.0
      %375 = vmatprep.subr.mxu0 0.0
      %376 = vmatpush1.msra.mxu0 0.0
      %377 = vmatprep.subr.mxu0 0.0
      %378 = vmatpush1.msra.mxu0 0.0
      %379 = vmatprep.subr.mxu0 0.0
      %380 = vmatpush1.msra.mxu0 0.0
      %381 = vmatprep.subr.mxu0 0.0
      %382 = vmatpush1.msra.mxu0 0.0
      %383 = vmatprep.subr.mxu0 0.0
      %384 = vmatpush1.msra.mxu0 0.0
      %385 = vmatprep.subr.mxu0 0.0
      %386 = vmatpush1.msra.mxu0 0.0
      %387 = vmatprep.subr.mxu0 0.0
      %388 = vmatpush1.msra.mxu0 0.0
      %389 = vmatprep.subr.mxu0 0.0
      %390 = vmatpush1.msra.mxu0 0.0
      %391 = vmatprep.subr.mxu0 0.0
      %392 = vmatpush1.msra.mxu0 0.0
      %393 = vmatprep.subr.mxu0 0.0
      %394 = vmatpush1.msra.mxu0 0.0
      %395 = vmatprep.subr.mxu0 0.0
      %396 = vmatpush1.msra.mxu0 0.0
      %397 = vmatprep.subr.mxu0 0.0
      %398 = vmatpush1.msra.mxu0 0.0
      %399 = vmatprep.subr.mxu0 0.0
      %400 = vmatpush1.msra.mxu0 0.0
      %401 = vmatprep.subr.mxu0 0.0
      %402 = vmatpush1.msra.mxu0 0.0
      %403 = vmatprep.subr.mxu0 0.0
      %404 = vmatpush1.msra.mxu0 0.0
      %405 = vmatprep.subr.mxu0 0.0
      %406 = vmatpush1.msra.mxu0 0.0
      %407 = vmatprep.subr.mxu0 0.0
      %408 = vmatpush1.msra.mxu0 0.0
      %409 = vmatprep.subr.mxu0 0.0
      %410 = vmatpush1.msra.mxu0 0.0
      %411 = vmatprep.subr.mxu0 0.0
      %412 = vmatpush1.msra.mxu0 0.0
      %413 = vmatprep.mubr.f32.mxu0 0.0
      %414 = vmatmul.mubr.f32.gmra.mrb[0].mxu0 %v347
      %v415 = vpop.f32.mrb[0].mxu0
      %v416 = vadd.f32 0.0, %v415
      %v417 = vpop.f32.mrb[0].mxu0
      %v418 = vadd.f32 0.0, %v417
      %419 = vdwg.mxu0
      %420 = vmatprep.subr.mxu0 0.0
      %421 = vmatpush1.msra.mxu0 %v341
      %422 = vmatprep.subr.mxu0 0.0
      %423 = vmatpush1.msra.mxu0 0.0
      %424 = vmatprep.subr.mxu0 0.0
      %425 = vmatpush1.msra.mxu0 0.0
      %426 = vmatprep.subr.mxu0 0.0
      %427 = vmatpush1.msra.mxu0 0.0
      %428 = vmatprep.subr.mxu0 0.0
      %429 = vmatpush1.msra.mxu0 0.0
      %430 = vmatprep.subr.mxu0 0.0
      %431 = vmatpush1.msra.mxu0 0.0
      %432 = vmatprep.subr.mxu0 0.0
      %433 = vmatpush1.msra.mxu0 0.0
      %434 = vmatprep.subr.mxu0 0.0
      %435 = vmatpush1.msra.mxu0 0.0
      %436 = vmatprep.subr.mxu0 0.0
      %437 = vmatpush1.msra.mxu0 0.0
      %438 = vmatprep.subr.mxu0 0.0
      %439 = vmatpush1.msra.mxu0 0.0
      %440 = vmatprep.subr.mxu0 0.0
      %441 = vmatpush1.msra.mxu0 0.0
      %442 = vmatprep.subr.mxu0 0.0
      %443 = vmatpush1.msra.mxu0 0.0
      %444 = vmatprep.subr.mxu0 0.0
      %445 = vmatpush1.msra.mxu0 0.0
      %446 = vmatprep.subr.mxu0 0.0
      %447 = vmatpush1.msra.mxu0 0.0
      %448 = vmatprep.subr.mxu0 0.0
      %449 = vmatpush1.msra.mxu0 0.0
      %450 = vmatprep.subr.mxu0 0.0
      %451 = vmatpush1.msra.mxu0 0.0
      %452 = vmatprep.subr.mxu0 0.0
      %453 = vmatpush1.msra.mxu0 0.0
      %454 = vmatprep.subr.mxu0 0.0
      %455 = vmatpush1.msra.mxu0 0.0
      %456 = vmatprep.subr.mxu0 0.0
      %457 = vmatpush1.msra.mxu0 0.0
      %458 = vmatprep.subr.mxu0 0.0
      %459 = vmatpush1.msra.mxu0 0.0
      %460 = vmatprep.subr.mxu0 0.0
      %461 = vmatpush1.msra.mxu0 0.0
      %462 = vmatprep.subr.mxu0 0.0
      %463 = vmatpush1.msra.mxu0 0.0
      %464 = vmatprep.subr.mxu0 0.0
      %465 = vmatpush1.msra.mxu0 0.0
      %466 = vmatprep.subr.mxu0 0.0
      %467 = vmatpush1.msra.mxu0 0.0
      %468 = vmatprep.subr.mxu0 0.0
      %469 = vmatpush1.msra.mxu0 0.0
      %470 = vmatprep.subr.mxu0 0.0
      %471 = vmatpush1.msra.mxu0 0.0
      %472 = vmatprep.subr.mxu0 0.0
      %473 = vmatpush1.msra.mxu0 0.0
      %474 = vmatprep.subr.mxu0 0.0
      %475 = vmatpush1.msra.mxu0 0.0
      %476 = vmatprep.subr.mxu0 0.0
      %477 = vmatpush1.msra.mxu0 0.0
      %478 = vmatprep.subr.mxu0 0.0
      %479 = vmatpush1.msra.mxu0 0.0
      %480 = vmatprep.subr.mxu0 0.0
      %481 = vmatpush1.msra.mxu0 0.0
      %482 = vmatprep.subr.mxu0 0.0
      %483 = vmatpush1.msra.mxu0 0.0
      %484 = vmatprep.mubr.f32.mxu0 0.0
      %485 = vmatmul.mubr.f32.gmra.mrb[0].mxu0 %v347
      %v486 = vpop.f32.mrb[0].mxu0
      %v487 = vadd.f32 0.0, %v486
      %v488 = vpop.f32.mrb[0].mxu0
      %489 = vdwg.mxu0
      %v491 = vsel %vm345, %v316, 0
      %493 = vmatprep.subr.mxu0 %v318
      %494 = vmatpush1.msra.mxu0 %v317
      %495 = vmatprep.subr.mxu0 0.0
      %496 = vmatpush1.msra.mxu0 0.0
      %497 = vmatprep.subr.mxu0 0.0
      %498 = vmatpush1.msra.mxu0 0.0
      %499 = vmatprep.subr.mxu0 0.0
      %500 = vmatpush1.msra.mxu0 0.0
      %501 = vmatprep.subr.mxu0 0.0
      %502 = vmatpush1.msra.mxu0 0.0
      %503 = vmatprep.subr.mxu0 0.0
      %504 = vmatpush1.msra.mxu0 0.0
      %505 = vmatprep.subr.mxu0 0.0
      %506 = vmatpush1.msra.mxu0 0.0
      %507 = vmatprep.subr.mxu0 0.0
      %508 = vmatpush1.msra.mxu0 0.0
      %509 = vmatprep.subr.mxu0 0.0
      %510 = vmatpush1.msra.mxu0 0.0
      %511 = vmatprep.subr.mxu0 0.0
      %512 = vmatpush1.msra.mxu0 0.0
      %513 = vmatprep.subr.mxu0 0.0
      %514 = vmatpush1.msra.mxu0 0.0
      %515 = vmatprep.subr.mxu0 0.0
      %516 = vmatpush1.msra.mxu0 0.0
      %517 = vmatprep.subr.mxu0 0.0
      %518 = vmatpush1.msra.mxu0 0.0
      %519 = vmatprep.subr.mxu0 0.0
      %520 = vmatpush1.msra.mxu0 0.0
      %521 = vmatprep.subr.mxu0 0.0
      %522 = vmatpush1.msra.mxu0 0.0
      %523 = vmatprep.subr.mxu0 0.0
      %524 = vmatpush1.msra.mxu0 0.0
      %525 = vmatprep.subr.mxu0 0.0
      %526 = vmatpush1.msra.mxu0 0.0
      %527 = vmatprep.subr.mxu0 0.0
      %528 = vmatpush1.msra.mxu0 0.0
      %529 = vmatprep.subr.mxu0 0.0
      %530 = vmatpush1.msra.mxu0 0.0
      %531 = vmatprep.subr.mxu0 0.0
      %532 = vmatpush1.msra.mxu0 0.0
      %533 = vmatprep.subr.mxu0 0.0
      %534 = vmatpush1.msra.mxu0 0.0
      %535 = vmatprep.subr.mxu0 0.0
      %536 = vmatpush1.msra.mxu0 0.0
      %537 = vmatprep.subr.mxu0 0.0
      %538 = vmatpush1.msra.mxu0 0.0
      %539 = vmatprep.subr.mxu0 0.0
      %540 = vmatpush1.msra.mxu0 0.0
      %541 = vmatprep.subr.mxu0 0.0
      %542 = vmatpush1.msra.mxu0 0.0
      %543 = vmatprep.subr.mxu0 0.0
      %544 = vmatpush1.msra.mxu0 0.0
      %545 = vmatprep.subr.mxu0 0.0
      %546 = vmatpush1.msra.mxu0 0.0
      %547 = vmatprep.subr.mxu0 0.0
      %548 = vmatpush1.msra.mxu0 0.0
      %549 = vmatprep.subr.mxu0 0.0
      %550 = vmatpush1.msra.mxu0 0.0
      %551 = vmatprep.subr.mxu0 0.0
      %552 = vmatpush1.msra.mxu0 0.0
      %553 = vmatprep.subr.mxu0 0.0
      %554 = vmatpush1.msra.mxu0 0.0
      %555 = vmatprep.subr.mxu0 0.0
      %556 = vmatpush1.msra.mxu0 0.0
      %557 = vmatprep.mubr.f32.mxu0 0.0
      %558 = vmatmul.mubr.f32.gmra.mrb[0].mxu0 %v491
      %v559 = vpop.f32.mrb[0].mxu0
      %v560 = vadd.f32 %v416, %v559
      %v561 = vpop.f32.mrb[0].mxu0
      %v562 = vadd.f32 %v418, %v561
      %563 = vdwg.mxu0
      %564 = vmatprep.subr.mxu0 0.0
      %565 = vmatpush1.msra.mxu0 %v319
      %566 = vmatprep.subr.mxu0 0.0
      %567 = vmatpush1.msra.mxu0 0.0
      %568 = vmatprep.subr.mxu0 0.0
      %569 = vmatpush1.msra.mxu0 0.0
      %570 = vmatprep.subr.mxu0 0.0
      %571 = vmatpush1.msra.mxu0 0.0
      %572 = vmatprep.subr.mxu0 0.0
      %573 = vmatpush1.msra.mxu0 0.0
      %574 = vmatprep.subr.mxu0 0.0
      %575 = vmatpush1.msra.mxu0 0.0
      %576 = vmatprep.subr.mxu0 0.0
      %577 = vmatpush1.msra.mxu0 0.0
      %578 = vmatprep.subr.mxu0 0.0
      %579 = vmatpush1.msra.mxu0 0.0
      %580 = vmatprep.subr.mxu0 0.0
      %581 = vmatpush1.msra.mxu0 0.0
      %582 = vmatprep.subr.mxu0 0.0
      %583 = vmatpush1.msra.mxu0 0.0
      %584 = vmatprep.subr.mxu0 0.0
      %585 = vmatpush1.msra.mxu0 0.0
      %586 = vmatprep.subr.mxu0 0.0
      %587 = vmatpush1.msra.mxu0 0.0
      %588 = vmatprep.subr.mxu0 0.0
      %589 = vmatpush1.msra.mxu0 0.0
      %590 = vmatprep.subr.mxu0 0.0
      %591 = vmatpush1.msra.mxu0 0.0
      %592 = vmatprep.subr.mxu0 0.0
      %593 = vmatpush1.msra.mxu0 0.0
      %594 = vmatprep.subr.mxu0 0.0
      %595 = vmatpush1.msra.mxu0 0.0
      %596 = vmatprep.subr.mxu0 0.0
      %597 = vmatpush1.msra.mxu0 0.0
      %598 = vmatprep.subr.mxu0 0.0
      %599 = vmatpush1.msra.mxu0 0.0
      %600 = vmatprep.subr.mxu0 0.0
      %601 = vmatpush1.msra.mxu0 0.0
      %602 = vmatprep.subr.mxu0 0.0
      %603 = vmatpush1.msra.mxu0 0.0
      %604 = vmatprep.subr.mxu0 0.0
      %605 = vmatpush1.msra.mxu0 0.0
      %606 = vmatprep.subr.mxu0 0.0
      %607 = vmatpush1.msra.mxu0 0.0
      %608 = vmatprep.subr.mxu0 0.0
      %609 = vmatpush1.msra.mxu0 0.0
      %610 = vmatprep.subr.mxu0 0.0
      %611 = vmatpush1.msra.mxu0 0.0
      %612 = vmatprep.subr.mxu0 0.0
      %613 = vmatpush1.msra.mxu0 0.0
      %614 = vmatprep.subr.mxu0 0.0
      %615 = vmatpush1.msra.mxu0 0.0
      %616 = vmatprep.subr.mxu0 0.0
      %617 = vmatpush1.msra.mxu0 0.0
      %618 = vmatprep.subr.mxu0 0.0
      %619 = vmatpush1.msra.mxu0 0.0
      %620 = vmatprep.subr.mxu0 0.0
      %621 = vmatpush1.msra.mxu0 0.0
      %622 = vmatprep.subr.mxu0 0.0
      %623 = vmatpush1.msra.mxu0 0.0
      %624 = vmatprep.subr.mxu0 0.0
      %625 = vmatpush1.msra.mxu0 0.0
      %626 = vmatprep.subr.mxu0 0.0
      %627 = vmatpush1.msra.mxu0 0.0
      %628 = vmatprep.mubr.f32.mxu0 0.0
      %629 = vmatmul.mubr.f32.gmra.mrb[0].mxu0 %v491
      %v630 = vpop.f32.mrb[0].mxu0
      %v631 = vadd.f32 %v487, %v630
      %v632 = vpop.f32.mrb[0].mxu0
      %633 = vdwg.mxu0
      %s634 = scalar_lea.vmem %s2, 16
      %v635 = vld [vmem:[%s634] sm:$0xff]
      %636 = vrot.lane.b32.xlu0 %v322, 126
      %v637 = vpop.permute.xlu0 %636
      %638 = vrot.lane.b32.xlu0 %v323, 126
      %v639 = vpop.permute.xlu0 %638
      %640 = vrot.lane.b32.xlu0 %v324, 126
      %v641 = vpop.permute.xlu0 %640
      %642 = vrot.lane.b32.xlu0 %v325, 126
      %v643 = vpop.permute.xlu0 %642
      %vm644 = vcmask 1031168
      %v645 = vsel %vm644, %v637, %v639
      %v646 = vsel %vm644, %v639, %v641
      %v647 = vsel %vm644, %v641, %v643
      %v652 = vsel %vm345, %v635, 0
      %654 = vmatprep.subr.mxu0 %v646
      %655 = vmatpush1.msra.mxu0 %v645
      %656 = vmatprep.subr.mxu0 0.0
      %657 = vmatpush1.msra.mxu0 0.0
      %658 = vmatprep.subr.mxu0 0.0
      %659 = vmatpush1.msra.mxu0 0.0
      %660 = vmatprep.subr.mxu0 0.0
      %661 = vmatpush1.msra.mxu0 0.0
      %662 = vmatprep.subr.mxu0 0.0
      %663 = vmatpush1.msra.mxu0 0.0
      %664 = vmatprep.subr.mxu0 0.0
      %665 = vmatpush1.msra.mxu0 0.0
      %666 = vmatprep.subr.mxu0 0.0
      %667 = vmatpush1.msra.mxu0 0.0
      %668 = vmatprep.subr.mxu0 0.0
      %669 = vmatpush1.msra.mxu0 0.0
      %670 = vmatprep.subr.mxu0 0.0
      %671 = vmatpush1.msra.mxu0 0.0
      %672 = vmatprep.subr.mxu0 0.0
      %673 = vmatpush1.msra.mxu0 0.0
      %674 = vmatprep.subr.mxu0 0.0
      %675 = vmatpush1.msra.mxu0 0.0
      %676 = vmatprep.subr.mxu0 0.0
      %677 = vmatpush1.msra.mxu0 0.0
      %678 = vmatprep.subr.mxu0 0.0
      %679 = vmatpush1.msra.mxu0 0.0
      %680 = vmatprep.subr.mxu0 0.0
      %681 = vmatpush1.msra.mxu0 0.0
      %682 = vmatprep.subr.mxu0 0.0
      %683 = vmatpush1.msra.mxu0 0.0
      %684 = vmatprep.subr.mxu0 0.0
      %685 = vmatpush1.msra.mxu0 0.0
      %686 = vmatprep.subr.mxu0 0.0
      %687 = vmatpush1.msra.mxu0 0.0
      %688 = vmatprep.subr.mxu0 0.0
      %689 = vmatpush1.msra.mxu0 0.0
      %690 = vmatprep.subr.mxu0 0.0
      %691 = vmatpush1.msra.mxu0 0.0
      %692 = vmatprep.subr.mxu0 0.0
      %693 = vmatpush1.msra.mxu0 0.0
      %694 = vmatprep.subr.mxu0 0.0
      %695 = vmatpush1.msra.mxu0 0.0
      %696 = vmatprep.subr.mxu0 0.0
      %697 = vmatpush1.msra.mxu0 0.0
      %698 = vmatprep.subr.mxu0 0.0
      %699 = vmatpush1.msra.mxu0 0.0
      %700 = vmatprep.subr.mxu0 0.0
      %701 = vmatpush1.msra.mxu0 0.0
      %702 = vmatprep.subr.mxu0 0.0
      %703 = vmatpush1.msra.mxu0 0.0
      %704 = vmatprep.subr.mxu0 0.0
      %705 = vmatpush1.msra.mxu0 0.0
      %706 = vmatprep.subr.mxu0 0.0
      %707 = vmatpush1.msra.mxu0 0.0
      %708 = vmatprep.subr.mxu0 0.0
      %709 = vmatpush1.msra.mxu0 0.0
      %710 = vmatprep.subr.mxu0 0.0
      %711 = vmatpush1.msra.mxu0 0.0
      %712 = vmatprep.subr.mxu0 0.0
      %713 = vmatpush1.msra.mxu0 0.0
      %714 = vmatprep.subr.mxu0 0.0
      %715 = vmatpush1.msra.mxu0 0.0
      %716 = vmatprep.subr.mxu0 0.0
      %717 = vmatpush1.msra.mxu0 0.0
      %718 = vmatprep.mubr.f32.mxu0 0.0
      %719 = vmatmul.mubr.f32.gmra.mrb[0].mxu0 %v652
      %v720 = vpop.f32.mrb[0].mxu0
      %v721 = vadd.f32 0.0, %v720
      %v722 = vpop.f32.mrb[0].mxu0
      %v723 = vadd.f32 0.0, %v722
      %724 = vdwg.mxu0
      %725 = vmatprep.subr.mxu0 0.0
      %726 = vmatpush1.msra.mxu0 %v647
      %727 = vmatprep.subr.mxu0 0.0
      %728 = vmatpush1.msra.mxu0 0.0
      %729 = vmatprep.subr.mxu0 0.0
      %730 = vmatpush1.msra.mxu0 0.0
      %731 = vmatprep.subr.mxu0 0.0
      %732 = vmatpush1.msra.mxu0 0.0
      %733 = vmatprep.subr.mxu0 0.0
      %734 = vmatpush1.msra.mxu0 0.0
      %735 = vmatprep.subr.mxu0 0.0
      %736 = vmatpush1.msra.mxu0 0.0
      %737 = vmatprep.subr.mxu0 0.0
      %738 = vmatpush1.msra.mxu0 0.0
      %739 = vmatprep.subr.mxu0 0.0
      %740 = vmatpush1.msra.mxu0 0.0
      %741 = vmatprep.subr.mxu0 0.0
      %742 = vmatpush1.msra.mxu0 0.0
      %743 = vmatprep.subr.mxu0 0.0
      %744 = vmatpush1.msra.mxu0 0.0
      %745 = vmatprep.subr.mxu0 0.0
      %746 = vmatpush1.msra.mxu0 0.0
      %747 = vmatprep.subr.mxu0 0.0
      %748 = vmatpush1.msra.mxu0 0.0
      %749 = vmatprep.subr.mxu0 0.0
      %750 = vmatpush1.msra.mxu0 0.0
      %751 = vmatprep.subr.mxu0 0.0
      %752 = vmatpush1.msra.mxu0 0.0
      %753 = vmatprep.subr.mxu0 0.0
      %754 = vmatpush1.msra.mxu0 0.0
      %755 = vmatprep.subr.mxu0 0.0
      %756 = vmatpush1.msra.mxu0 0.0
      %757 = vmatprep.subr.mxu0 0.0
      %758 = vmatpush1.msra.mxu0 0.0
      %759 = vmatprep.subr.mxu0 0.0
      %760 = vmatpush1.msra.mxu0 0.0
      %761 = vmatprep.subr.mxu0 0.0
      %762 = vmatpush1.msra.mxu0 0.0
      %763 = vmatprep.subr.mxu0 0.0
      %764 = vmatpush1.msra.mxu0 0.0
      %765 = vmatprep.subr.mxu0 0.0
      %766 = vmatpush1.msra.mxu0 0.0
      %767 = vmatprep.subr.mxu0 0.0
      %768 = vmatpush1.msra.mxu0 0.0
      %769 = vmatprep.subr.mxu0 0.0
      %770 = vmatpush1.msra.mxu0 0.0
      %771 = vmatprep.subr.mxu0 0.0
      %772 = vmatpush1.msra.mxu0 0.0
      %773 = vmatprep.subr.mxu0 0.0
      %774 = vmatpush1.msra.mxu0 0.0
      %775 = vmatprep.subr.mxu0 0.0
      %776 = vmatpush1.msra.mxu0 0.0
      %777 = vmatprep.subr.mxu0 0.0
      %778 = vmatpush1.msra.mxu0 0.0
      %779 = vmatprep.subr.mxu0 0.0
      %780 = vmatpush1.msra.mxu0 0.0
      %781 = vmatprep.subr.mxu0 0.0
      %782 = vmatpush1.msra.mxu0 0.0
      %783 = vmatprep.subr.mxu0 0.0
      %784 = vmatpush1.msra.mxu0 0.0
      %785 = vmatprep.subr.mxu0 0.0
      %786 = vmatpush1.msra.mxu0 0.0
      %787 = vmatprep.subr.mxu0 0.0
      %788 = vmatpush1.msra.mxu0 0.0
      %789 = vmatprep.mubr.f32.mxu0 0.0
      %790 = vmatmul.mubr.f32.gmra.mrb[0].mxu0 %v652
      %v791 = vpop.f32.mrb[0].mxu0
      %v792 = vadd.f32 0.0, %v791
      %v793 = vpop.f32.mrb[0].mxu0
      %794 = vdwg.mxu0
      %v795 = vadd.f32 %v560, %v721
      %v796 = vadd.f32 %v562, %v723
      %v797 = vadd.f32 %v631, %v792
      %s798 = scalar_lea.vmem %s2, 24
      %v799 = vld [vmem:[%s798] sm:$0xff]
      %800 = vrot.lane.b32.xlu0 %v322, 110
      %v801 = vpop.permute.xlu0 %800
      %802 = vrot.lane.b32.xlu0 %v323, 110
      %v803 = vpop.permute.xlu0 %802
      %804 = vrot.lane.b32.xlu0 %v324, 110
      %v805 = vpop.permute.xlu0 %804
      %806 = vrot.lane.b32.xlu0 %v325, 110
      %v807 = vpop.permute.xlu0 %806
      %vm808 = vcmask 900096
      %v809 = vsel %vm808, %v801, %v803
      %v810 = vsel %vm808, %v803, %v805
      %v811 = vsel %vm808, %v805, %v807
      %v816 = vsel %vm345, %v799, 0
      %818 = vmatprep.subr.mxu0 %v810
      %819 = vmatpush1.msra.mxu0 %v809
      %820 = vmatprep.subr.mxu0 0.0
      %821 = vmatpush1.msra.mxu0 0.0
      %822 = vmatprep.subr.mxu0 0.0
      %823 = vmatpush1.msra.mxu0 0.0
      %824 = vmatprep.subr.mxu0 0.0
      %825 = vmatpush1.msra.mxu0 0.0
      %826 = vmatprep.subr.mxu0 0.0
      %827 = vmatpush1.msra.mxu0 0.0
      %828 = vmatprep.subr.mxu0 0.0
      %829 = vmatpush1.msra.mxu0 0.0
      %830 = vmatprep.subr.mxu0 0.0
      %831 = vmatpush1.msra.mxu0 0.0
      %832 = vmatprep.subr.mxu0 0.0
      %833 = vmatpush1.msra.mxu0 0.0
      %834 = vmatprep.subr.mxu0 0.0
      %835 = vmatpush1.msra.mxu0 0.0
      %836 = vmatprep.subr.mxu0 0.0
      %837 = vmatpush1.msra.mxu0 0.0
      %838 = vmatprep.subr.mxu0 0.0
      %839 = vmatpush1.msra.mxu0 0.0
      %840 = vmatprep.subr.mxu0 0.0
      %841 = vmatpush1.msra.mxu0 0.0
      %842 = vmatprep.subr.mxu0 0.0
      %843 = vmatpush1.msra.mxu0 0.0
      %844 = vmatprep.subr.mxu0 0.0
      %845 = vmatpush1.msra.mxu0 0.0
      %846 = vmatprep.subr.mxu0 0.0
      %847 = vmatpush1.msra.mxu0 0.0
      %848 = vmatprep.subr.mxu0 0.0
      %849 = vmatpush1.msra.mxu0 0.0
      %850 = vmatprep.subr.mxu0 0.0
      %851 = vmatpush1.msra.mxu0 0.0
      %852 = vmatprep.subr.mxu0 0.0
      %853 = vmatpush1.msra.mxu0 0.0
      %854 = vmatprep.subr.mxu0 0.0
      %855 = vmatpush1.msra.mxu0 0.0
      %856 = vmatprep.subr.mxu0 0.0
      %857 = vmatpush1.msra.mxu0 0.0
      %858 = vmatprep.subr.mxu0 0.0
      %859 = vmatpush1.msra.mxu0 0.0
      %860 = vmatprep.subr.mxu0 0.0
      %861 = vmatpush1.msra.mxu0 0.0
      %862 = vmatprep.subr.mxu0 0.0
      %863 = vmatpush1.msra.mxu0 0.0
      %864 = vmatprep.subr.mxu0 0.0
      %865 = vmatpush1.msra.mxu0 0.0
      %866 = vmatprep.subr.mxu0 0.0
      %867 = vmatpush1.msra.mxu0 0.0
      %868 = vmatprep.subr.mxu0 0.0
      %869 = vmatpush1.msra.mxu0 0.0
      %870 = vmatprep.subr.mxu0 0.0
      %871 = vmatpush1.msra.mxu0 0.0
      %872 = vmatprep.subr.mxu0 0.0
      %873 = vmatpush1.msra.mxu0 0.0
      %874 = vmatprep.subr.mxu0 0.0
      %875 = vmatpush1.msra.mxu0 0.0
      %876 = vmatprep.subr.mxu0 0.0
      %877 = vmatpush1.msra.mxu0 0.0
      %878 = vmatprep.subr.mxu0 0.0
      %879 = vmatpush1.msra.mxu0 0.0
      %880 = vmatprep.subr.mxu0 0.0
      %881 = vmatpush1.msra.mxu0 0.0
      %882 = vmatprep.mubr.f32.mxu0 0.0
      %883 = vmatmul.mubr.f32.gmra.mrb[0].mxu0 %v816
      %v884 = vpop.f32.mrb[0].mxu0
      %v885 = vadd.f32 0.0, %v884
      %v886 = vpop.f32.mrb[0].mxu0
      %v887 = vadd.f32 0.0, %v886
      %888 = vdwg.mxu0
      %889 = vmatprep.subr.mxu0 0.0
      %890 = vmatpush1.msra.mxu0 %v811
      %891 = vmatprep.subr.mxu0 0.0
      %892 = vmatpush1.msra.mxu0 0.0
      %893 = vmatprep.subr.mxu0 0.0
      %894 = vmatpush1.msra.mxu0 0.0
      %895 = vmatprep.subr.mxu0 0.0
      %896 = vmatpush1.msra.mxu0 0.0
      %897 = vmatprep.subr.mxu0 0.0
      %898 = vmatpush1.msra.mxu0 0.0
      %899 = vmatprep.subr.mxu0 0.0
      %900 = vmatpush1.msra.mxu0 0.0
      %901 = vmatprep.subr.mxu0 0.0
      %902 = vmatpush1.msra.mxu0 0.0
      %903 = vmatprep.subr.mxu0 0.0
      %904 = vmatpush1.msra.mxu0 0.0
      %905 = vmatprep.subr.mxu0 0.0
      %906 = vmatpush1.msra.mxu0 0.0
      %907 = vmatprep.subr.mxu0 0.0
      %908 = vmatpush1.msra.mxu0 0.0
      %909 = vmatprep.subr.mxu0 0.0
      %910 = vmatpush1.msra.mxu0 0.0
      %911 = vmatprep.subr.mxu0 0.0
      %912 = vmatpush1.msra.mxu0 0.0
      %913 = vmatprep.subr.mxu0 0.0
      %914 = vmatpush1.msra.mxu0 0.0
      %915 = vmatprep.subr.mxu0 0.0
      %916 = vmatpush1.msra.mxu0 0.0
      %917 = vmatprep.subr.mxu0 0.0
      %918 = vmatpush1.msra.mxu0 0.0
      %919 = vmatprep.subr.mxu0 0.0
      %920 = vmatpush1.msra.mxu0 0.0
      %921 = vmatprep.subr.mxu0 0.0
      %922 = vmatpush1.msra.mxu0 0.0
      %923 = vmatprep.subr.mxu0 0.0
      %924 = vmatpush1.msra.mxu0 0.0
      %925 = vmatprep.subr.mxu0 0.0
      %926 = vmatpush1.msra.mxu0 0.0
      %927 = vmatprep.subr.mxu0 0.0
      %928 = vmatpush1.msra.mxu0 0.0
      %929 = vmatprep.subr.mxu0 0.0
      %930 = vmatpush1.msra.mxu0 0.0
      %931 = vmatprep.subr.mxu0 0.0
      %932 = vmatpush1.msra.mxu0 0.0
      %933 = vmatprep.subr.mxu0 0.0
      %934 = vmatpush1.msra.mxu0 0.0
      %935 = vmatprep.subr.mxu0 0.0
      %936 = vmatpush1.msra.mxu0 0.0
      %937 = vmatprep.subr.mxu0 0.0
      %938 = vmatpush1.msra.mxu0 0.0
      %939 = vmatprep.subr.mxu0 0.0
      %940 = vmatpush1.msra.mxu0 0.0
      %941 = vmatprep.subr.mxu0 0.0
      %942 = vmatpush1.msra.mxu0 0.0
      %943 = vmatprep.subr.mxu0 0.0
      %944 = vmatpush1.msra.mxu0 0.0
      %945 = vmatprep.subr.mxu0 0.0
      %946 = vmatpush1.msra.mxu0 0.0
      %947 = vmatprep.subr.mxu0 0.0
      %948 = vmatpush1.msra.mxu0 0.0
      %949 = vmatprep.subr.mxu0 0.0
      %950 = vmatpush1.msra.mxu0 0.0
      %951 = vmatprep.subr.mxu0 0.0
      %952 = vmatpush1.msra.mxu0 0.0
      %953 = vmatprep.mubr.f32.mxu0 0.0
      %954 = vmatmul.mubr.f32.gmra.mrb[0].mxu0 %v816
      %v955 = vpop.f32.mrb[0].mxu0
      %v956 = vadd.f32 0.0, %v955
      %v957 = vpop.f32.mrb[0].mxu0
      %958 = vdwg.mxu0
      %v959 = vadd.f32 %v795, %v885
      %v960 = vadd.f32 %v796, %v887
      %v961 = vadd.f32 %v797, %v956
      %s962 = scalar_lea.vmem %s2, 32
      %v963 = vld [vmem:[%s962] sm:$0xff]
      %964 = vrot.lane.b32.xlu0 %v322, 109
      %v965 = vpop.permute.xlu0 %964
      %966 = vrot.lane.b32.xlu0 %v323, 109
      %v967 = vpop.permute.xlu0 %966
      %968 = vrot.lane.b32.xlu0 %v324, 109
      %v969 = vpop.permute.xlu0 %968
      %970 = vrot.lane.b32.xlu0 %v325, 109
      %v971 = vpop.permute.xlu0 %970
      %vm972 = vcmask 891904
      %v973 = vsel %vm972, %v965, %v967
      %v974 = vsel %vm972, %v967, %v969
      %v975 = vsel %vm972, %v969, %v971
      %v980 = vsel %vm345, %v963, 0
      %982 = vmatprep.subr.mxu0 %v974
      %983 = vmatpush1.msra.mxu0 %v973
      %984 = vmatprep.subr.mxu0 0.0
      %985 = vmatpush1.msra.mxu0 0.0
      %986 = vmatprep.subr.mxu0 0.0
      %987 = vmatpush1.msra.mxu0 0.0
      %988 = vmatprep.subr.mxu0 0.0
      %989 = vmatpush1.msra.mxu0 0.0
      %990 = vmatprep.subr.mxu0 0.0
      %991 = vmatpush1.msra.mxu0 0.0
      %992 = vmatprep.subr.mxu0 0.0
      %993 = vmatpush1.msra.mxu0 0.0
      %994 = vmatprep.subr.mxu0 0.0
      %995 = vmatpush1.msra.mxu0 0.0
      %996 = vmatprep.subr.mxu0 0.0
      %997 = vmatpush1.msra.mxu0 0.0
      %998 = vmatprep.subr.mxu0 0.0
      %999 = vmatpush1.msra.mxu0 0.0
      %1000 = vmatprep.subr.mxu0 0.0
      %1001 = vmatpush1.msra.mxu0 0.0
      %1002 = vmatprep.subr.mxu0 0.0
      %1003 = vmatpush1.msra.mxu0 0.0
      %1004 = vmatprep.subr.mxu0 0.0
      %1005 = vmatpush1.msra.mxu0 0.0
      %1006 = vmatprep.subr.mxu0 0.0
      %1007 = vmatpush1.msra.mxu0 0.0
      %1008 = vmatprep.subr.mxu0 0.0
      %1009 = vmatpush1.msra.mxu0 0.0
      %1010 = vmatprep.subr.mxu0 0.0
      %1011 = vmatpush1.msra.mxu0 0.0
      %1012 = vmatprep.subr.mxu0 0.0
      %1013 = vmatpush1.msra.mxu0 0.0
      %1014 = vmatprep.subr.mxu0 0.0
      %1015 = vmatpush1.msra.mxu0 0.0
      %1016 = vmatprep.subr.mxu0 0.0
      %1017 = vmatpush1.msra.mxu0 0.0
      %1018 = vmatprep.subr.mxu0 0.0
      %1019 = vmatpush1.msra.mxu0 0.0
      %1020 = vmatprep.subr.mxu0 0.0
      %1021 = vmatpush1.msra.mxu0 0.0
      %1022 = vmatprep.subr.mxu0 0.0
      %1023 = vmatpush1.msra.mxu0 0.0
      %1024 = vmatprep.subr.mxu0 0.0
      %1025 = vmatpush1.msra.mxu0 0.0
      %1026 = vmatprep.subr.mxu0 0.0
      %1027 = vmatpush1.msra.mxu0 0.0
      %1028 = vmatprep.subr.mxu0 0.0
      %1029 = vmatpush1.msra.mxu0 0.0
      %1030 = vmatprep.subr.mxu0 0.0
      %1031 = vmatpush1.msra.mxu0 0.0
      %1032 = vmatprep.subr.mxu0 0.0
      %1033 = vmatpush1.msra.mxu0 0.0
      %1034 = vmatprep.subr.mxu0 0.0
      %1035 = vmatpush1.msra.mxu0 0.0
      %1036 = vmatprep.subr.mxu0 0.0
      %1037 = vmatpush1.msra.mxu0 0.0
      %1038 = vmatprep.subr.mxu0 0.0
      %1039 = vmatpush1.msra.mxu0 0.0
      %1040 = vmatprep.subr.mxu0 0.0
      %1041 = vmatpush1.msra.mxu0 0.0
      %1042 = vmatprep.subr.mxu0 0.0
      %1043 = vmatpush1.msra.mxu0 0.0
      %1044 = vmatprep.subr.mxu0 0.0
      %1045 = vmatpush1.msra.mxu0 0.0
      %1046 = vmatprep.mubr.f32.mxu0 0.0
      %1047 = vmatmul.mubr.f32.gmra.mrb[0].mxu0 %v980
      %v1048 = vpop.f32.mrb[0].mxu0
      %v1049 = vadd.f32 0.0, %v1048
      %v1050 = vpop.f32.mrb[0].mxu0
      %v1051 = vadd.f32 0.0, %v1050
      %1052 = vdwg.mxu0
      %1053 = vmatprep.subr.mxu0 0.0
      %1054 = vmatpush1.msra.mxu0 %v975
      %1055 = vmatprep.subr.mxu0 0.0
      %1056 = vmatpush1.msra.mxu0 0.0
      %1057 = vmatprep.subr.mxu0 0.0
      %1058 = vmatpush1.msra.mxu0 0.0
      %1059 = vmatprep.subr.mxu0 0.0
      %1060 = vmatpush1.msra.mxu0 0.0
      %1061 = vmatprep.subr.mxu0 0.0
      %1062 = vmatpush1.msra.mxu0 0.0
      %1063 = vmatprep.subr.mxu0 0.0
      %1064 = vmatpush1.msra.mxu0 0.0
      %1065 = vmatprep.subr.mxu0 0.0
      %1066 = vmatpush1.msra.mxu0 0.0
      %1067 = vmatprep.subr.mxu0 0.0
      %1068 = vmatpush1.msra.mxu0 0.0
      %1069 = vmatprep.subr.mxu0 0.0
      %1070 = vmatpush1.msra.mxu0 0.0
      %1071 = vmatprep.subr.mxu0 0.0
      %1072 = vmatpush1.msra.mxu0 0.0
      %1073 = vmatprep.subr.mxu0 0.0
      %1074 = vmatpush1.msra.mxu0 0.0
      %1075 = vmatprep.subr.mxu0 0.0
      %1076 = vmatpush1.msra.mxu0 0.0
      %1077 = vmatprep.subr.mxu0 0.0
      %1078 = vmatpush1.msra.mxu0 0.0
      %1079 = vmatprep.subr.mxu0 0.0
      %1080 = vmatpush1.msra.mxu0 0.0
      %1081 = vmatprep.subr.mxu0 0.0
      %1082 = vmatpush1.msra.mxu0 0.0
      %1083 = vmatprep.subr.mxu0 0.0
      %1084 = vmatpush1.msra.mxu0 0.0
      %1085 = vmatprep.subr.mxu0 0.0
      %1086 = vmatpush1.msra.mxu0 0.0
      %1087 = vmatprep.subr.mxu0 0.0
      %1088 = vmatpush1.msra.mxu0 0.0
      %1089 = vmatprep.subr.mxu0 0.0
      %1090 = vmatpush1.msra.mxu0 0.0
      %1091 = vmatprep.subr.mxu0 0.0
      %1092 = vmatpush1.msra.mxu0 0.0
      %1093 = vmatprep.subr.mxu0 0.0
      %1094 = vmatpush1.msra.mxu0 0.0
      %1095 = vmatprep.subr.mxu0 0.0
      %1096 = vmatpush1.msra.mxu0 0.0
      %1097 = vmatprep.subr.mxu0 0.0
      %1098 = vmatpush1.msra.mxu0 0.0
      %1099 = vmatprep.subr.mxu0 0.0
      %1100 = vmatpush1.msra.mxu0 0.0
      %1101 = vmatprep.subr.mxu0 0.0
      %1102 = vmatpush1.msra.mxu0 0.0
      %1103 = vmatprep.subr.mxu0 0.0
      %1104 = vmatpush1.msra.mxu0 0.0
      %1105 = vmatprep.subr.mxu0 0.0
      %1106 = vmatpush1.msra.mxu0 0.0
      %1107 = vmatprep.subr.mxu0 0.0
      %1108 = vmatpush1.msra.mxu0 0.0
      %1109 = vmatprep.subr.mxu0 0.0
      %1110 = vmatpush1.msra.mxu0 0.0
      %1111 = vmatprep.subr.mxu0 0.0
      %1112 = vmatpush1.msra.mxu0 0.0
      %1113 = vmatprep.subr.mxu0 0.0
      %1114 = vmatpush1.msra.mxu0 0.0
      %1115 = vmatprep.subr.mxu0 0.0
      %1116 = vmatpush1.msra.mxu0 0.0
      %1117 = vmatprep.mubr.f32.mxu0 0.0
      %1118 = vmatmul.mubr.f32.gmra.mrb[0].mxu0 %v980
      %v1119 = vpop.f32.mrb[0].mxu0
      %v1120 = vadd.f32 0.0, %v1119
      %v1121 = vpop.f32.mrb[0].mxu0
      %1122 = vdwg.mxu0
      %v1123 = vadd.f32 %v959, %v1049
      %v1124 = vadd.f32 %v960, %v1051
      %v1125 = vadd.f32 %v961, %v1120
      %s1126 = scalar_lea.vmem %s2, 40
      %v1127 = vld [vmem:[%s1126] sm:$0xff]
      %1128 = vrot.lane.b32.xlu0 %v322, 108
      %v1129 = vpop.permute.xlu0 %1128
      %1130 = vrot.lane.b32.xlu0 %v323, 108
      %v1131 = vpop.permute.xlu0 %1130
      %1132 = vrot.lane.b32.xlu0 %v324, 108
      %v1133 = vpop.permute.xlu0 %1132
      %1134 = vrot.lane.b32.xlu0 %v325, 108
      %v1135 = vpop.permute.xlu0 %1134
      %vm1136 = vcmask 883712
      %v1137 = vsel %vm1136, %v1129, %v1131
      %v1138 = vsel %vm1136, %v1131, %v1133
      %v1139 = vsel %vm1136, %v1133, %v1135
      %v1144 = vsel %vm345, %v1127, 0
      %1146 = vmatprep.subr.mxu0 %v1138
      %1147 = vmatpush1.msra.mxu0 %v1137
      %1148 = vmatprep.subr.mxu0 0.0
      %1149 = vmatpush1.msra.mxu0 0.0
      %1150 = vmatprep.subr.mxu0 0.0
      %1151 = vmatpush1.msra.mxu0 0.0
      %1152 = vmatprep.subr.mxu0 0.0
      %1153 = vmatpush1.msra.mxu0 0.0
      %1154 = vmatprep.subr.mxu0 0.0
      %1155 = vmatpush1.msra.mxu0 0.0
      %1156 = vmatprep.subr.mxu0 0.0
      %1157 = vmatpush1.msra.mxu0 0.0
      %1158 = vmatprep.subr.mxu0 0.0
      %1159 = vmatpush1.msra.mxu0 0.0
      %1160 = vmatprep.subr.mxu0 0.0
      %1161 = vmatpush1.msra.mxu0 0.0
      %1162 = vmatprep.subr.mxu0 0.0
      %1163 = vmatpush1.msra.mxu0 0.0
      %1164 = vmatprep.subr.mxu0 0.0
      %1165 = vmatpush1.msra.mxu0 0.0
      %1166 = vmatprep.subr.mxu0 0.0
      %1167 = vmatpush1.msra.mxu0 0.0
      %1168 = vmatprep.subr.mxu0 0.0
      %1169 = vmatpush1.msra.mxu0 0.0
      %1170 = vmatprep.subr.mxu0 0.0
      %1171 = vmatpush1.msra.mxu0 0.0
      %1172 = vmatprep.subr.mxu0 0.0
      %1173 = vmatpush1.msra.mxu0 0.0
      %1174 = vmatprep.subr.mxu0 0.0
      %1175 = vmatpush1.msra.mxu0 0.0
      %1176 = vmatprep.subr.mxu0 0.0
      %1177 = vmatpush1.msra.mxu0 0.0
      %1178 = vmatprep.subr.mxu0 0.0
      %1179 = vmatpush1.msra.mxu0 0.0
      %1180 = vmatprep.subr.mxu0 0.0
      %1181 = vmatpush1.msra.mxu0 0.0
      %1182 = vmatprep.subr.mxu0 0.0
      %1183 = vmatpush1.msra.mxu0 0.0
      %1184 = vmatprep.subr.mxu0 0.0
      %1185 = vmatpush1.msra.mxu0 0.0
      %1186 = vmatprep.subr.mxu0 0.0
      %1187 = vmatpush1.msra.mxu0 0.0
      %1188 = vmatprep.subr.mxu0 0.0
      %1189 = vmatpush1.msra.mxu0 0.0
      %1190 = vmatprep.subr.mxu0 0.0
      %1191 = vmatpush1.msra.mxu0 0.0
      %1192 = vmatprep.subr.mxu0 0.0
      %1193 = vmatpush1.msra.mxu0 0.0
      %1194 = vmatprep.subr.mxu0 0.0
      %1195 = vmatpush1.msra.mxu0 0.0
      %1196 = vmatprep.subr.mxu0 0.0
      %1197 = vmatpush1.msra.mxu0 0.0
      %1198 = vmatprep.subr.mxu0 0.0
      %1199 = vmatpush1.msra.mxu0 0.0
      %1200 = vmatprep.subr.mxu0 0.0
      %1201 = vmatpush1.msra.mxu0 0.0
      %1202 = vmatprep.subr.mxu0 0.0
      %1203 = vmatpush1.msra.mxu0 0.0
      %1204 = vmatprep.subr.mxu0 0.0
      %1205 = vmatpush1.msra.mxu0 0.0
      %1206 = vmatprep.subr.mxu0 0.0
      %1207 = vmatpush1.msra.mxu0 0.0
      %1208 = vmatprep.subr.mxu0 0.0
      %1209 = vmatpush1.msra.mxu0 0.0
      %1210 = vmatprep.mubr.f32.mxu0 0.0
      %1211 = vmatmul.mubr.f32.gmra.mrb[0].mxu0 %v1144
      %v1212 = vpop.f32.mrb[0].mxu0
      %v1213 = vadd.f32 0.0, %v1212
      %v1214 = vpop.f32.mrb[0].mxu0
      %v1215 = vadd.f32 0.0, %v1214
      %1216 = vdwg.mxu0
      %1217 = vmatprep.subr.mxu0 0.0
      %1218 = vmatpush1.msra.mxu0 %v1139
      %1219 = vmatprep.subr.mxu0 0.0
      %1220 = vmatpush1.msra.mxu0 0.0
      %1221 = vmatprep.subr.mxu0 0.0
      %1222 = vmatpush1.msra.mxu0 0.0
      %1223 = vmatprep.subr.mxu0 0.0
      %1224 = vmatpush1.msra.mxu0 0.0
      %1225 = vmatprep.subr.mxu0 0.0
      %1226 = vmatpush1.msra.mxu0 0.0
      %1227 = vmatprep.subr.mxu0 0.0
      %1228 = vmatpush1.msra.mxu0 0.0
      %1229 = vmatprep.subr.mxu0 0.0
      %1230 = vmatpush1.msra.mxu0 0.0
      %1231 = vmatprep.subr.mxu0 0.0
      %1232 = vmatpush1.msra.mxu0 0.0
      %1233 = vmatprep.subr.mxu0 0.0
      %1234 = vmatpush1.msra.mxu0 0.0
      %1235 = vmatprep.subr.mxu0 0.0
      %1236 = vmatpush1.msra.mxu0 0.0
      %1237 = vmatprep.subr.mxu0 0.0
      %1238 = vmatpush1.msra.mxu0 0.0
      %1239 = vmatprep.subr.mxu0 0.0
      %1240 = vmatpush1.msra.mxu0 0.0
      %1241 = vmatprep.subr.mxu0 0.0
      %1242 = vmatpush1.msra.mxu0 0.0
      %1243 = vmatprep.subr.mxu0 0.0
      %1244 = vmatpush1.msra.mxu0 0.0
      %1245 = vmatprep.subr.mxu0 0.0
      %1246 = vmatpush1.msra.mxu0 0.0
      %1247 = vmatprep.subr.mxu0 0.0
      %1248 = vmatpush1.msra.mxu0 0.0
      %1249 = vmatprep.subr.mxu0 0.0
      %1250 = vmatpush1.msra.mxu0 0.0
      %1251 = vmatprep.subr.mxu0 0.0
      %1252 = vmatpush1.msra.mxu0 0.0
      %1253 = vmatprep.subr.mxu0 0.0
      %1254 = vmatpush1.msra.mxu0 0.0
      %1255 = vmatprep.subr.mxu0 0.0
      %1256 = vmatpush1.msra.mxu0 0.0
      %1257 = vmatprep.subr.mxu0 0.0
      %1258 = vmatpush1.msra.mxu0 0.0
      %1259 = vmatprep.subr.mxu0 0.0
      %1260 = vmatpush1.msra.mxu0 0.0
      %1261 = vmatprep.subr.mxu0 0.0
      %1262 = vmatpush1.msra.mxu0 0.0
      %1263 = vmatprep.subr.mxu0 0.0
      %1264 = vmatpush1.msra.mxu0 0.0
      %1265 = vmatprep.subr.mxu0 0.0
      %1266 = vmatpush1.msra.mxu0 0.0
      %1267 = vmatprep.subr.mxu0 0.0
      %1268 = vmatpush1.msra.mxu0 0.0
      %1269 = vmatprep.subr.mxu0 0.0
      %1270 = vmatpush1.msra.mxu0 0.0
      %1271 = vmatprep.subr.mxu0 0.0
      %1272 = vmatpush1.msra.mxu0 0.0
      %1273 = vmatprep.subr.mxu0 0.0
      %1274 = vmatpush1.msra.mxu0 0.0
      %1275 = vmatprep.subr.mxu0 0.0
      %1276 = vmatpush1.msra.mxu0 0.0
      %1277 = vmatprep.subr.mxu0 0.0
      %1278 = vmatpush1.msra.mxu0 0.0
      %1279 = vmatprep.subr.mxu0 0.0
      %1280 = vmatpush1.msra.mxu0 0.0
      %1281 = vmatprep.mubr.f32.mxu0 0.0
      %1282 = vmatmul.mubr.f32.gmra.mrb[0].mxu0 %v1144
      %v1283 = vpop.f32.mrb[0].mxu0
      %v1284 = vadd.f32 0.0, %v1283
      %v1285 = vpop.f32.mrb[0].mxu0
      %1286 = vdwg.mxu0
      %v1287 = vadd.f32 %v1123, %v1213
      %v1288 = vadd.f32 %v1124, %v1215
      %v1289 = vadd.f32 %v1125, %v1284
      %s1290 = scalar_lea.vmem %s2, 48
      %v1291 = vld [vmem:[%s1290] sm:$0xff]
      %1292 = vrot.lane.b32.xlu0 %v322, 92
      %v1293 = vpop.permute.xlu0 %1292
      %1294 = vrot.lane.b32.xlu0 %v323, 92
      %v1295 = vpop.permute.xlu0 %1294
      %1296 = vrot.lane.b32.xlu0 %v324, 92
      %v1297 = vpop.permute.xlu0 %1296
      %1298 = vrot.lane.b32.xlu0 %v325, 92
      %v1299 = vpop.permute.xlu0 %1298
      %vm1300 = vcmask 752640
      %v1301 = vsel %vm1300, %v1293, %v1295
      %v1302 = vsel %vm1300, %v1295, %v1297
      %v1303 = vsel %vm1300, %v1297, %v1299
      %v1308 = vsel %vm345, %v1291, 0
      %1310 = vmatprep.subr.mxu0 %v1302
      %1311 = vmatpush1.msra.mxu0 %v1301
      %1312 = vmatprep.subr.mxu0 0.0
      %1313 = vmatpush1.msra.mxu0 0.0
      %1314 = vmatprep.subr.mxu0 0.0
      %1315 = vmatpush1.msra.mxu0 0.0
      %1316 = vmatprep.subr.mxu0 0.0
      %1317 = vmatpush1.msra.mxu0 0.0
      %1318 = vmatprep.subr.mxu0 0.0
      %1319 = vmatpush1.msra.mxu0 0.0
      %1320 = vmatprep.subr.mxu0 0.0
      %1321 = vmatpush1.msra.mxu0 0.0
      %1322 = vmatprep.subr.mxu0 0.0
      %1323 = vmatpush1.msra.mxu0 0.0
      %1324 = vmatprep.subr.mxu0 0.0
      %1325 = vmatpush1.msra.mxu0 0.0
      %1326 = vmatprep.subr.mxu0 0.0
      %1327 = vmatpush1.msra.mxu0 0.0
      %1328 = vmatprep.subr.mxu0 0.0
      %1329 = vmatpush1.msra.mxu0 0.0
      %1330 = vmatprep.subr.mxu0 0.0
      %1331 = vmatpush1.msra.mxu0 0.0
      %1332 = vmatprep.subr.mxu0 0.0
      %1333 = vmatpush1.msra.mxu0 0.0
      %1334 = vmatprep.subr.mxu0 0.0
      %1335 = vmatpush1.msra.mxu0 0.0
      %1336 = vmatprep.subr.mxu0 0.0
      %1337 = vmatpush1.msra.mxu0 0.0
      %1338 = vmatprep.subr.mxu0 0.0
      %1339 = vmatpush1.msra.mxu0 0.0
      %1340 = vmatprep.subr.mxu0 0.0
      %1341 = vmatpush1.msra.mxu0 0.0
      %1342 = vmatprep.subr.mxu0 0.0
      %1343 = vmatpush1.msra.mxu0 0.0
      %1344 = vmatprep.subr.mxu0 0.0
      %1345 = vmatpush1.msra.mxu0 0.0
      %1346 = vmatprep.subr.mxu0 0.0
      %1347 = vmatpush1.msra.mxu0 0.0
      %1348 = vmatprep.subr.mxu0 0.0
      %1349 = vmatpush1.msra.mxu0 0.0
      %1350 = vmatprep.subr.mxu0 0.0
      %1351 = vmatpush1.msra.mxu0 0.0
      %1352 = vmatprep.subr.mxu0 0.0
      %1353 = vmatpush1.msra.mxu0 0.0
      %1354 = vmatprep.subr.mxu0 0.0
      %1355 = vmatpush1.msra.mxu0 0.0
      %1356 = vmatprep.subr.mxu0 0.0
      %1357 = vmatpush1.msra.mxu0 0.0
      %1358 = vmatprep.subr.mxu0 0.0
      %1359 = vmatpush1.msra.mxu0 0.0
      %1360 = vmatprep.subr.mxu0 0.0
      %1361 = vmatpush1.msra.mxu0 0.0
      %1362 = vmatprep.subr.mxu0 0.0
      %1363 = vmatpush1.msra.mxu0 0.0
      %1364 = vmatprep.subr.mxu0 0.0
      %1365 = vmatpush1.msra.mxu0 0.0
      %1366 = vmatprep.subr.mxu0 0.0
      %1367 = vmatpush1.msra.mxu0 0.0
      %1368 = vmatprep.subr.mxu0 0.0
      %1369 = vmatpush1.msra.mxu0 0.0
      %1370 = vmatprep.subr.mxu0 0.0
      %1371 = vmatpush1.msra.mxu0 0.0
      %1372 = vmatprep.subr.mxu0 0.0
      %1373 = vmatpush1.msra.mxu0 0.0
      %1374 = vmatprep.mubr.f32.mxu0 0.0
      %1375 = vmatmul.mubr.f32.gmra.mrb[0].mxu0 %v1308
      %v1376 = vpop.f32.mrb[0].mxu0
      %v1377 = vadd.f32 0.0, %v1376
      %v1378 = vpop.f32.mrb[0].mxu0
      %v1379 = vadd.f32 0.0, %v1378
      %1380 = vdwg.mxu0
      %1381 = vmatprep.subr.mxu0 0.0
      %1382 = vmatpush1.msra.mxu0 %v1303
      %1383 = vmatprep.subr.mxu0 0.0
      %1384 = vmatpush1.msra.mxu0 0.0
      %1385 = vmatprep.subr.mxu0 0.0
      %1386 = vmatpush1.msra.mxu0 0.0
      %1387 = vmatprep.subr.mxu0 0.0
      %1388 = vmatpush1.msra.mxu0 0.0
      %1389 = vmatprep.subr.mxu0 0.0
      %1390 = vmatpush1.msra.mxu0 0.0
      %1391 = vmatprep.subr.mxu0 0.0
      %1392 = vmatpush1.msra.mxu0 0.0
      %1393 = vmatprep.subr.mxu0 0.0
      %1394 = vmatpush1.msra.mxu0 0.0
      %1395 = vmatprep.subr.mxu0 0.0
      %1396 = vmatpush1.msra.mxu0 0.0
      %1397 = vmatprep.subr.mxu0 0.0
      %1398 = vmatpush1.msra.mxu0 0.0
      %1399 = vmatprep.subr.mxu0 0.0
      %1400 = vmatpush1.msra.mxu0 0.0
      %1401 = vmatprep.subr.mxu0 0.0
      %1402 = vmatpush1.msra.mxu0 0.0
      %1403 = vmatprep.subr.mxu0 0.0
      %1404 = vmatpush1.msra.mxu0 0.0
      %1405 = vmatprep.subr.mxu0 0.0
      %1406 = vmatpush1.msra.mxu0 0.0
      %1407 = vmatprep.subr.mxu0 0.0
      %1408 = vmatpush1.msra.mxu0 0.0
      %1409 = vmatprep.subr.mxu0 0.0
      %1410 = vmatpush1.msra.mxu0 0.0
      %1411 = vmatprep.subr.mxu0 0.0
      %1412 = vmatpush1.msra.mxu0 0.0
      %1413 = vmatprep.subr.mxu0 0.0
      %1414 = vmatpush1.msra.mxu0 0.0
      %1415 = vmatprep.subr.mxu0 0.0
      %1416 = vmatpush1.msra.mxu0 0.0
      %1417 = vmatprep.subr.mxu0 0.0
      %1418 = vmatpush1.msra.mxu0 0.0
      %1419 = vmatprep.subr.mxu0 0.0
      %1420 = vmatpush1.msra.mxu0 0.0
      %1421 = vmatprep.subr.mxu0 0.0
      %1422 = vmatpush1.msra.mxu0 0.0
      %1423 = vmatprep.subr.mxu0 0.0
      %1424 = vmatpush1.msra.mxu0 0.0
      %1425 = vmatprep.subr.mxu0 0.0
      %1426 = vmatpush1.msra.mxu0 0.0
      %1427 = vmatprep.subr.mxu0 0.0
      %1428 = vmatpush1.msra.mxu0 0.0
      %1429 = vmatprep.subr.mxu0 0.0
      %1430 = vmatpush1.msra.mxu0 0.0
      %1431 = vmatprep.subr.mxu0 0.0
      %1432 = vmatpush1.msra.mxu0 0.0
      %1433 = vmatprep.subr.mxu0 0.0
      %1434 = vmatpush1.msra.mxu0 0.0
      %1435 = vmatprep.subr.mxu0 0.0
      %1436 = vmatpush1.msra.mxu0 0.0
      %1437 = vmatprep.subr.mxu0 0.0
      %1438 = vmatpush1.msra.mxu0 0.0
      %1439 = vmatprep.subr.mxu0 0.0
      %1440 = vmatpush1.msra.mxu0 0.0
      %1441 = vmatprep.subr.mxu0 0.0
      %1442 = vmatpush1.msra.mxu0 0.0
      %1443 = vmatprep.subr.mxu0 0.0
      %1444 = vmatpush1.msra.mxu0 0.0
      %1445 = vmatprep.mubr.f32.mxu0 0.0
      %1446 = vmatmul.mubr.f32.gmra.mrb[0].mxu0 %v1308
      %v1447 = vpop.f32.mrb[0].mxu0
      %v1448 = vadd.f32 0.0, %v1447
      %v1449 = vpop.f32.mrb[0].mxu0
      %1450 = vdwg.mxu0
      %v1451 = vadd.f32 %v1287, %v1377
      %v1452 = vadd.f32 %v1288, %v1379
      %v1453 = vadd.f32 %v1289, %v1448
      %s1454 = scalar_lea.vmem %s2, 56
      %v1455 = vld [vmem:[%s1454] sm:$0xff]
      %1456 = vrot.lane.b32.xlu0 %v322, 91
      %v1457 = vpop.permute.xlu0 %1456
      %1458 = vrot.lane.b32.xlu0 %v323, 91
      %v1459 = vpop.permute.xlu0 %1458
      %1460 = vrot.lane.b32.xlu0 %v324, 91
      %v1461 = vpop.permute.xlu0 %1460
      %1462 = vrot.lane.b32.xlu0 %v325, 91
      %v1463 = vpop.permute.xlu0 %1462
      %vm1464 = vcmask 744448
      %v1465 = vsel %vm1464, %v1457, %v1459
      %v1466 = vsel %vm1464, %v1459, %v1461
      %v1467 = vsel %vm1464, %v1461, %v1463
      %v1472 = vsel %vm345, %v1455, 0
      %1474 = vmatprep.subr.mxu0 %v1466
      %1475 = vmatpush1.msra.mxu0 %v1465
      %1476 = vmatprep.subr.mxu0 0.0
      %1477 = vmatpush1.msra.mxu0 0.0
      %1478 = vmatprep.subr.mxu0 0.0
      %1479 = vmatpush1.msra.mxu0 0.0
      %1480 = vmatprep.subr.mxu0 0.0
      %1481 = vmatpush1.msra.mxu0 0.0
      %1482 = vmatprep.subr.mxu0 0.0
      %1483 = vmatpush1.msra.mxu0 0.0
      %1484 = vmatprep.subr.mxu0 0.0
      %1485 = vmatpush1.msra.mxu0 0.0
      %1486 = vmatprep.subr.mxu0 0.0
      %1487 = vmatpush1.msra.mxu0 0.0
      %1488 = vmatprep.subr.mxu0 0.0
      %1489 = vmatpush1.msra.mxu0 0.0
      %1490 = vmatprep.subr.mxu0 0.0
      %1491 = vmatpush1.msra.mxu0 0.0
      %1492 = vmatprep.subr.mxu0 0.0
      %1493 = vmatpush1.msra.mxu0 0.0
      %1494 = vmatprep.subr.mxu0 0.0
      %1495 = vmatpush1.msra.mxu0 0.0
      %1496 = vmatprep.subr.mxu0 0.0
      %1497 = vmatpush1.msra.mxu0 0.0
      %1498 = vmatprep.subr.mxu0 0.0
      %1499 = vmatpush1.msra.mxu0 0.0
      %1500 = vmatprep.subr.mxu0 0.0
      %1501 = vmatpush1.msra.mxu0 0.0
      %1502 = vmatprep.subr.mxu0 0.0
      %1503 = vmatpush1.msra.mxu0 0.0
      %1504 = vmatprep.subr.mxu0 0.0
      %1505 = vmatpush1.msra.mxu0 0.0
      %1506 = vmatprep.subr.mxu0 0.0
      %1507 = vmatpush1.msra.mxu0 0.0
      %1508 = vmatprep.subr.mxu0 0.0
      %1509 = vmatpush1.msra.mxu0 0.0
      %1510 = vmatprep.subr.mxu0 0.0
      %1511 = vmatpush1.msra.mxu0 0.0
      %1512 = vmatprep.subr.mxu0 0.0
      %1513 = vmatpush1.msra.mxu0 0.0
      %1514 = vmatprep.subr.mxu0 0.0
      %1515 = vmatpush1.msra.mxu0 0.0
      %1516 = vmatprep.subr.mxu0 0.0
      %1517 = vmatpush1.msra.mxu0 0.0
      %1518 = vmatprep.subr.mxu0 0.0
      %1519 = vmatpush1.msra.mxu0 0.0
      %1520 = vmatprep.subr.mxu0 0.0
      %1521 = vmatpush1.msra.mxu0 0.0
      %1522 = vmatprep.subr.mxu0 0.0
      %1523 = vmatpush1.msra.mxu0 0.0
      %1524 = vmatprep.subr.mxu0 0.0
      %1525 = vmatpush1.msra.mxu0 0.0
      %1526 = vmatprep.subr.mxu0 0.0
      %1527 = vmatpush1.msra.mxu0 0.0
      %1528 = vmatprep.subr.mxu0 0.0
      %1529 = vmatpush1.msra.mxu0 0.0
      %1530 = vmatprep.subr.mxu0 0.0
      %1531 = vmatpush1.msra.mxu0 0.0
      %1532 = vmatprep.subr.mxu0 0.0
      %1533 = vmatpush1.msra.mxu0 0.0
      %1534 = vmatprep.subr.mxu0 0.0
      %1535 = vmatpush1.msra.mxu0 0.0
      %1536 = vmatprep.subr.mxu0 0.0
      %1537 = vmatpush1.msra.mxu0 0.0
      %1538 = vmatprep.mubr.f32.mxu0 0.0
      %1539 = vmatmul.mubr.f32.gmra.mrb[0].mxu0 %v1472
      %v1540 = vpop.f32.mrb[0].mxu0
      %v1541 = vadd.f32 0.0, %v1540
      %v1542 = vpop.f32.mrb[0].mxu0
      %v1543 = vadd.f32 0.0, %v1542
      %1544 = vdwg.mxu0
      %1545 = vmatprep.subr.mxu0 0.0
      %1546 = vmatpush1.msra.mxu0 %v1467
      %1547 = vmatprep.subr.mxu0 0.0
      %1548 = vmatpush1.msra.mxu0 0.0
      %1549 = vmatprep.subr.mxu0 0.0
      %1550 = vmatpush1.msra.mxu0 0.0
      %1551 = vmatprep.subr.mxu0 0.0
      %1552 = vmatpush1.msra.mxu0 0.0
      %1553 = vmatprep.subr.mxu0 0.0
      %1554 = vmatpush1.msra.mxu0 0.0
      %1555 = vmatprep.subr.mxu0 0.0
      %1556 = vmatpush1.msra.mxu0 0.0
      %1557 = vmatprep.subr.mxu0 0.0
      %1558 = vmatpush1.msra.mxu0 0.0
      %1559 = vmatprep.subr.mxu0 0.0
      %1560 = vmatpush1.msra.mxu0 0.0
      %1561 = vmatprep.subr.mxu0 0.0
      %1562 = vmatpush1.msra.mxu0 0.0
      %1563 = vmatprep.subr.mxu0 0.0
      %1564 = vmatpush1.msra.mxu0 0.0
      %1565 = vmatprep.subr.mxu0 0.0
      %1566 = vmatpush1.msra.mxu0 0.0
      %1567 = vmatprep.subr.mxu0 0.0
      %1568 = vmatpush1.msra.mxu0 0.0
      %1569 = vmatprep.subr.mxu0 0.0
      %1570 = vmatpush1.msra.mxu0 0.0
      %1571 = vmatprep.subr.mxu0 0.0
      %1572 = vmatpush1.msra.mxu0 0.0
      %1573 = vmatprep.subr.mxu0 0.0
      %1574 = vmatpush1.msra.mxu0 0.0
      %1575 = vmatprep.subr.mxu0 0.0
      %1576 = vmatpush1.msra.mxu0 0.0
      %1577 = vmatprep.subr.mxu0 0.0
      %1578 = vmatpush1.msra.mxu0 0.0
      %1579 = vmatprep.subr.mxu0 0.0
      %1580 = vmatpush1.msra.mxu0 0.0
      %1581 = vmatprep.subr.mxu0 0.0
      %1582 = vmatpush1.msra.mxu0 0.0
      %1583 = vmatprep.subr.mxu0 0.0
      %1584 = vmatpush1.msra.mxu0 0.0
      %1585 = vmatprep.subr.mxu0 0.0
      %1586 = vmatpush1.msra.mxu0 0.0
      %1587 = vmatprep.subr.mxu0 0.0
      %1588 = vmatpush1.msra.mxu0 0.0
      %1589 = vmatprep.subr.mxu0 0.0
      %1590 = vmatpush1.msra.mxu0 0.0
      %1591 = vmatprep.subr.mxu0 0.0
      %1592 = vmatpush1.msra.mxu0 0.0
      %1593 = vmatprep.subr.mxu0 0.0
      %1594 = vmatpush1.msra.mxu0 0.0
      %1595 = vmatprep.subr.mxu0 0.0
      %1596 = vmatpush1.msra.mxu0 0.0
      %1597 = vmatprep.subr.mxu0 0.0
      %1598 = vmatpush1.msra.mxu0 0.0
      %1599 = vmatprep.subr.mxu0 0.0
      %1600 = vmatpush1.msra.mxu0 0.0
      %1601 = vmatprep.subr.mxu0 0.0
      %1602 = vmatpush1.msra.mxu0 0.0
      %1603 = vmatprep.subr.mxu0 0.0
      %1604 = vmatpush1.msra.mxu0 0.0
      %1605 = vmatprep.subr.mxu0 0.0
      %1606 = vmatpush1.msra.mxu0 0.0
      %1607 = vmatprep.subr.mxu0 0.0
      %1608 = vmatpush1.msra.mxu0 0.0
      %1609 = vmatprep.mubr.f32.mxu0 0.0
      %1610 = vmatmul.mubr.f32.gmra.mrb[0].mxu0 %v1472
      %v1611 = vpop.f32.mrb[0].mxu0
      %v1612 = vadd.f32 0.0, %v1611
      %v1613 = vpop.f32.mrb[0].mxu0
      %1614 = vdwg.mxu0
      %v1615 = vadd.f32 %v1451, %v1541
      %v1616 = vadd.f32 %v1452, %v1543
      %v1617 = vadd.f32 %v1453, %v1612
      %s1618 = scalar_lea.vmem %s2, 64
      %v1619 = vld [vmem:[%s1618] sm:$0xff]
      %1620 = vrot.lane.b32.xlu0 %v322, 90
      %v1621 = vpop.permute.xlu0 %1620
      %1622 = vrot.lane.b32.xlu0 %v323, 90
      %v1623 = vpop.permute.xlu0 %1622
      %1624 = vrot.lane.b32.xlu0 %v324, 90
      %v1625 = vpop.permute.xlu0 %1624
      %1626 = vrot.lane.b32.xlu0 %v325, 90
      %v1627 = vpop.permute.xlu0 %1626
      %vm1628 = vcmask 736256
      %v1629 = vsel %vm1628, %v1621, %v1623
      %v1630 = vsel %vm1628, %v1623, %v1625
      %v1631 = vsel %vm1628, %v1625, %v1627
      %v1636 = vsel %vm345, %v1619, 0
      %1638 = vmatprep.subr.mxu0 %v1630
      %1639 = vmatpush1.msra.mxu0 %v1629
      %1640 = vmatprep.subr.mxu0 0.0
      %1641 = vmatpush1.msra.mxu0 0.0
      %1642 = vmatprep.subr.mxu0 0.0
      %1643 = vmatpush1.msra.mxu0 0.0
      %1644 = vmatprep.subr.mxu0 0.0
      %1645 = vmatpush1.msra.mxu0 0.0
      %1646 = vmatprep.subr.mxu0 0.0
      %1647 = vmatpush1.msra.mxu0 0.0
      %1648 = vmatprep.subr.mxu0 0.0
      %1649 = vmatpush1.msra.mxu0 0.0
      %1650 = vmatprep.subr.mxu0 0.0
      %1651 = vmatpush1.msra.mxu0 0.0
      %1652 = vmatprep.subr.mxu0 0.0
      %1653 = vmatpush1.msra.mxu0 0.0
      %1654 = vmatprep.subr.mxu0 0.0
      %1655 = vmatpush1.msra.mxu0 0.0
      %1656 = vmatprep.subr.mxu0 0.0
      %1657 = vmatpush1.msra.mxu0 0.0
      %1658 = vmatprep.subr.mxu0 0.0
      %1659 = vmatpush1.msra.mxu0 0.0
      %1660 = vmatprep.subr.mxu0 0.0
      %1661 = vmatpush1.msra.mxu0 0.0
      %1662 = vmatprep.subr.mxu0 0.0
      %1663 = vmatpush1.msra.mxu0 0.0
      %1664 = vmatprep.subr.mxu0 0.0
      %1665 = vmatpush1.msra.mxu0 0.0
      %1666 = vmatprep.subr.mxu0 0.0
      %1667 = vmatpush1.msra.mxu0 0.0
      %1668 = vmatprep.subr.mxu0 0.0
      %1669 = vmatpush1.msra.mxu0 0.0
      %1670 = vmatprep.subr.mxu0 0.0
      %1671 = vmatpush1.msra.mxu0 0.0
      %1672 = vmatprep.subr.mxu0 0.0
      %1673 = vmatpush1.msra.mxu0 0.0
      %1674 = vmatprep.subr.mxu0 0.0
      %1675 = vmatpush1.msra.mxu0 0.0
      %1676 = vmatprep.subr.mxu0 0.0
      %1677 = vmatpush1.msra.mxu0 0.0
      %1678 = vmatprep.subr.mxu0 0.0
      %1679 = vmatpush1.msra.mxu0 0.0
      %1680 = vmatprep.subr.mxu0 0.0
      %1681 = vmatpush1.msra.mxu0 0.0
      %1682 = vmatprep.subr.mxu0 0.0
      %1683 = vmatpush1.msra.mxu0 0.0
      %1684 = vmatprep.subr.mxu0 0.0
      %1685 = vmatpush1.msra.mxu0 0.0
      %1686 = vmatprep.subr.mxu0 0.0
      %1687 = vmatpush1.msra.mxu0 0.0
      %1688 = vmatprep.subr.mxu0 0.0
      %1689 = vmatpush1.msra.mxu0 0.0
      %1690 = vmatprep.subr.mxu0 0.0
      %1691 = vmatpush1.msra.mxu0 0.0
      %1692 = vmatprep.subr.mxu0 0.0
      %1693 = vmatpush1.msra.mxu0 0.0
      %1694 = vmatprep.subr.mxu0 0.0
      %1695 = vmatpush1.msra.mxu0 0.0
      %1696 = vmatprep.subr.mxu0 0.0
      %1697 = vmatpush1.msra.mxu0 0.0
      %1698 = vmatprep.subr.mxu0 0.0
      %1699 = vmatpush1.msra.mxu0 0.0
      %1700 = vmatprep.subr.mxu0 0.0
      %1701 = vmatpush1.msra.mxu0 0.0
      %1702 = vmatprep.mubr.f32.mxu0 0.0
      %1703 = vmatmul.mubr.f32.gmra.mrb[0].mxu0 %v1636
      %v1704 = vpop.f32.mrb[0].mxu0
      %v1705 = vadd.f32 0.0, %v1704
      %v1706 = vpop.f32.mrb[0].mxu0
      %v1707 = vadd.f32 0.0, %v1706
      %1708 = vdwg.mxu0
      %1709 = vmatprep.subr.mxu0 0.0
      %1710 = vmatpush1.msra.mxu0 %v1631
      %1711 = vmatprep.subr.mxu0 0.0
      %1712 = vmatpush1.msra.mxu0 0.0
      %1713 = vmatprep.subr.mxu0 0.0
      %1714 = vmatpush1.msra.mxu0 0.0
      %1715 = vmatprep.subr.mxu0 0.0
      %1716 = vmatpush1.msra.mxu0 0.0
      %1717 = vmatprep.subr.mxu0 0.0
      %1718 = vmatpush1.msra.mxu0 0.0
      %1719 = vmatprep.subr.mxu0 0.0
      %1720 = vmatpush1.msra.mxu0 0.0
      %1721 = vmatprep.subr.mxu0 0.0
      %1722 = vmatpush1.msra.mxu0 0.0
      %1723 = vmatprep.subr.mxu0 0.0
      %1724 = vmatpush1.msra.mxu0 0.0
      %1725 = vmatprep.subr.mxu0 0.0
      %1726 = vmatpush1.msra.mxu0 0.0
      %1727 = vmatprep.subr.mxu0 0.0
      %1728 = vmatpush1.msra.mxu0 0.0
      %1729 = vmatprep.subr.mxu0 0.0
      %1730 = vmatpush1.msra.mxu0 0.0
      %1731 = vmatprep.subr.mxu0 0.0
      %1732 = vmatpush1.msra.mxu0 0.0
      %1733 = vmatprep.subr.mxu0 0.0
      %1734 = vmatpush1.msra.mxu0 0.0
      %1735 = vmatprep.subr.mxu0 0.0
      %1736 = vmatpush1.msra.mxu0 0.0
      %1737 = vmatprep.subr.mxu0 0.0
      %1738 = vmatpush1.msra.mxu0 0.0
      %1739 = vmatprep.subr.mxu0 0.0
      %1740 = vmatpush1.msra.mxu0 0.0
      %1741 = vmatprep.subr.mxu0 0.0
      %1742 = vmatpush1.msra.mxu0 0.0
      %1743 = vmatprep.subr.mxu0 0.0
      %1744 = vmatpush1.msra.mxu0 0.0
      %1745 = vmatprep.subr.mxu0 0.0
      %1746 = vmatpush1.msra.mxu0 0.0
      %1747 = vmatprep.subr.mxu0 0.0
      %1748 = vmatpush1.msra.mxu0 0.0
      %1749 = vmatprep.subr.mxu0 0.0
      %1750 = vmatpush1.msra.mxu0 0.0
      %1751 = vmatprep.subr.mxu0 0.0
      %1752 = vmatpush1.msra.mxu0 0.0
      %1753 = vmatprep.subr.mxu0 0.0
      %1754 = vmatpush1.msra.mxu0 0.0
      %1755 = vmatprep.subr.mxu0 0.0
      %1756 = vmatpush1.msra.mxu0 0.0
      %1757 = vmatprep.subr.mxu0 0.0
      %1758 = vmatpush1.msra.mxu0 0.0
      %1759 = vmatprep.subr.mxu0 0.0
      %1760 = vmatpush1.msra.mxu0 0.0
      %1761 = vmatprep.subr.mxu0 0.0
      %1762 = vmatpush1.msra.mxu0 0.0
      %1763 = vmatprep.subr.mxu0 0.0
      %1764 = vmatpush1.msra.mxu0 0.0
      %1765 = vmatprep.subr.mxu0 0.0
      %1766 = vmatpush1.msra.mxu0 0.0
      %1767 = vmatprep.subr.mxu0 0.0
      %1768 = vmatpush1.msra.mxu0 0.0
      %1769 = vmatprep.subr.mxu0 0.0
      %1770 = vmatpush1.msra.mxu0 0.0
      %1771 = vmatprep.subr.mxu0 0.0
      %1772 = vmatpush1.msra.mxu0 0.0
      %1773 = vmatprep.mubr.f32.mxu0 0.0
      %1774 = vmatmul.mubr.f32.gmra.mrb[0].mxu0 %v1636
      %v1775 = vpop.f32.mrb[0].mxu0
      %v1776 = vadd.f32 0.0, %v1775
      %v1777 = vpop.f32.mrb[0].mxu0
      %1778 = vdwg.mxu0
      %v1779 = vadd.f32 %v1615, %v1705
      %v1780 = vadd.f32 %v1616, %v1707
      %v1781 = vadd.f32 %v1617, %v1776
      %v1782 = vld [vmem:[%s3] sm:$0xff]
      %1784 = vset.pattern.permute.xlu0 0
      %1785 = vperm.xlu0 %1784, %v1782
      %v1786 = vpop.permute.xlu0 %1785
      %v1788 = vadd.f32 %v1779, %v1786
      %v1789 = vadd.f32 %v1780, %v1786
      %v1790 = vadd.f32 %v1781, %v1786
      %1791 = vst [vmem:[%s300] sm:$0xff] %v1788
      %1792 = vst [vmem:[%s300 + $0x8] sm:$0xff] %v1789
      %1793 = vst [vmem:[%s300 + $0x10] sm:$0xff] %v1790
      %s1794 = smul.u32 3, %s20
      %p1795 = scmp.lt.s32.totalorder %s19, 1
      %s1796 = scalar_select %p1795, %s19, 1
      %p1797 = scmp.lt.s32.totalorder %s1794, 2
      %s1798 = scalar_select %p1797, %s1794, 2
      %s1799 = smul.addr %s1796, 3
      %s1800 = sadd.s32 %s1798, %s1799
      %s1801 = smul.addr %s1800, 8
      %s1802 = scalar_lea.vmem %s4, %s1801
      // Predicated region
      $region37: #{_lambda_.1} parent=35 // pred_check
        %p1803 = pneg %p149
      $region38: #{_lambda_.1} parent=35 // pred_check_branch
        %1805 = sbr.rel (%p1803) target = $region40
      $region39: #{_lambda_.1} parent=35 // pred_region
        %s1806 = smul.u32 3, %s20
      $region40: #{_lambda_.1} parent=35 // pred_fallthru
        _
    $region36: #{_lambda_.1} parent=5 // pred_fallthru
      _
    %p1807 = scmp.le.s32.totalorder 2, %s10
    // Predicated region
    $region41: #{_lambda_.1} parent=5 // pred_check
      %p1808 = pneg %p1807
    $region42: #{_lambda_.1} parent=5 // pred_check_branch
      %1810 = sbr.rel (%p1808) target = $region44
    $region43: #{_lambda_.1} parent=5 // pred_region
      %s1811 = ssub.s32 %s10, 2
      // Predicated region
      $region45: #{_lambda_.1} parent=43 // pred_check
        %p1812 = pneg %p155
      $region46: #{_lambda_.1} parent=43 // pred_check_branch
        %1814 = sbr.rel (%p1812) target = $region48
      $region47: #{_lambda_.1} parent=43 // pred_region
        %s1815 = smul.u32 3, %s22
        %p1816 = scmp.lt.s32.totalorder %s21, 1
        %s1817 = scalar_select %p1816, %s21, 1
        %p1818 = scmp.lt.s32.totalorder %s1815, 2
        %s1819 = scalar_select %p1818, %s1815, 2
        %s1820 = smul.addr %s1817, 3
        %s1821 = sadd.s32 %s1819, %s1820
        %s1822 = smul.addr %s1821, 8
        %s1823 = scalar_lea.vmem %s4, %s1822
      $region48: #{_lambda_.1} parent=43 // pred_fallthru
        _
    $region44: #{_lambda_.1} parent=5 // pred_fallthru
      _
  $region6: #{_lambda_.1} parent=0 // loop_footer
    %s14 = sadd.s32 1, %s10
  $region7: #{_lambda_.1} parent=0 // loop_footer_branch
    %9 = sbr.rel target = $region3
  $region8: #{_lambda_.1} parent=0 // loop_exit
    _

</llo_original>
